<compile_context>
chip_gen: v5e
topology: v5e:2x2
jax: 0.10.0
libtpu: 0.0.40
codegen_flags: <defaults>
</compile_context>

<pallas_src>
import functools

import jax
import jax.numpy as jnp
from jax import lax
from jax.experimental import pallas as pl
from jax.experimental.pallas import tpu as pltpu


def _round_up(x, m):
    return ((x + m - 1) // m) * m


# ----------------------------- Pallas kernel --------------------------------
def _conv_tap_kernel(x_ref, w_ref, shift_ref, o_ref, *, K, dilation, Wp, OH1,
                     relu):
    """One (image, OC-tile) grid step.

    x_ref:     (L, C)        bf16  flattened padded image, L = (Hp+extra)*Wp
    w_ref:     (K*K*C, OCt)  bf16  scale-folded weights, tap-major rows
    shift_ref: (1, OCt)      f32   folded bias / BN shift
    o_ref:     (M1, OCt)     f32   stride-1 output rows, M1 = OH1 * Wp
                                   (columns >= OW1 of each row are garbage and
                                    are sliced off by the wrapper)
    """
    C = x_ref.shape[-1]
    OCt = o_ref.shape[-1]
    M1 = OH1 * Wp

    acc = jnp.zeros((M1, OCt), jnp.float32)

    # Statically unrolled tap loop: conv == sum of K*K shifted matmuls.
    # For tap (kh, kw) the needed rows of the flattened image are the
    # contiguous range [dilation*(kh*Wp + kw), ... + M1)  (stride-1 conv).
    for kh in range(K):
        for kw in range(K):
            r0 = dilation * (kh * Wp + kw)
            win = x_ref[r0:r0 + M1, :]                      # (M1, C)   bf16
            tap = kh * K + kw
            wt = w_ref[tap * C:(tap + 1) * C, :]            # (C, OCt)  bf16
            acc = acc + jnp.dot(win, wt,
                                preferred_element_type=jnp.float32)

    acc = acc + shift_ref[...]                              # f32 epilogue
    if relu:
        acc = jnp.maximum(acc, 0.0)
    o_ref[...] = acc.astype(o_ref.dtype)


def _fused_conv2d(x_flat, w2d, shift, *, K, dilation, Wp, OH1, relu):
    """x_flat: (N, L, C) bf16, w2d: (K*K*C, OCp) bf16, shift: (1, OCp) f32."""
    N, L, C = x_flat.shape
    KKC, OCp = w2d.shape
    M1 = OH1 * Wp

    # Lane-dense OC tile (multiple of 128); 256 fills the v6e/v7x MXU N dim.
    OCt = 256 if OCp % 256 == 0 else 128
    OCt = min(OCt, OCp)

    # Explicit VMEM budget: double-buffered in/out blocks + headroom.
    block_bytes = L * C * 2 + KKC * OCt * 2 + OCt * 4 + M1 * OCt * 4
    vmem_limit = int(min(64 << 20, max(16 << 20, 8 * block_bytes)))

    kernel = functools.partial(_conv_tap_kernel, K=K, dilation=dilation,
                               Wp=Wp, OH1=OH1, relu=relu)

    return pl.pallas_call(
        kernel,
        out_shape=jax.ShapeDtypeStruct((N, M1, OCp), jnp.float32),
        grid_spec=pltpu.PrefetchScalarGridSpec(
            num_scalar_prefetch=0,
            grid=(N, OCp // OCt),
            in_specs=[
                # x block depends only on n -> stays resident across OC tiles.
                pl.BlockSpec((None, L, C), lambda n, j: (n, 0, 0)),
                pl.BlockSpec((KKC, OCt), lambda n, j: (0, j)),
                pl.BlockSpec((1, OCt), lambda n, j: (0, j)),
            ],
            out_specs=pl.BlockSpec((None, M1, OCt), lambda n, j: (n, 0, j)),
        ),
        compiler_params=pltpu.CompilerParams(
            dimension_semantics=("parallel", "parallel"),
            vmem_limit_bytes=vmem_limit),
    )(x_flat, w2d, shift)


# ------------------------------ module (JAX) ---------------------------------
class BasicConv:
    """JAX/Pallas equivalent of the PyTorch BasicConv module."""

    def __init__(self, in_planes, out_planes, kernel_size, stride=1, padding=0,
                 dilation=1, groups=1, relu=True, bn=False, bias=False,
                 key=jax.random.PRNGKey(0)):
        assert groups == 1  # TODO(synk): grouped conv not implemented (module default groups=1)
        self.in_planes = in_planes
        self.out_channels = out_planes
        self.kernel_size = kernel_size
        self.stride = stride
        self.padding = padding
        self.dilation = dilation
        self.relu = relu
        self.bn = bn

        kw, kb = jax.random.split(key)
        fan_in = in_planes * kernel_size * kernel_size
        bound = 1.0 / jnp.sqrt(fan_in)
        self.weight = jax.random.uniform(
            kw, (out_planes, in_planes, kernel_size, kernel_size),
            jnp.float32, -bound, bound)
        self.bias = (jax.random.uniform(kb, (out_planes,), jnp.float32,
                                        -bound, bound) if bias else None)
        if bn:
            # TODO(synk): BatchNorm implemented in inference form (running stats);
            # PyTorch training-mode batch statistics are not reproduced.
            self.gamma = jnp.ones((out_planes,), jnp.float32)
            self.beta = jnp.zeros((out_planes,), jnp.float32)
            self.running_mean = jnp.zeros((out_planes,), jnp.float32)
            self.running_var = jnp.ones((out_planes,), jnp.float32)
            self.eps = 1e-5

    def __call__(self, x):
        N, C, H, W = x.shape
        assert C == self.in_planes
        K, s, p, d = self.kernel_size, self.stride, self.padding, self.dilation
        OC = self.out_channels

        # Kernel always computes the stride-1 conv; stride>1 is subsampled after.
        # TODO(synk): dedicated strided path to avoid the s^2 compute waste.
        OH1 = H + 2 * p - d * (K - 1)
        OW1 = W + 2 * p - d * (K - 1)
        Hp, Wp = H + 2 * p, W + 2 * p
        OCp = _round_up(OC, 128)

        # Fold bias / BN into per-channel scale & shift; scale goes into W.
        scale = jnp.ones((OC,), jnp.float32)
        shift = jnp.zeros((OC,), jnp.float32)
        if self.bias is not None:
            shift = shift + self.bias
        if self.bn:
            inv_std = 1.0 / jnp.sqrt(self.running_var + self.eps)
            scale = scale * self.gamma * inv_std
            shift = (shift - self.running_mean) * self.gamma * inv_std + self.beta

        # NHWC, spatial zero-pad (+ extra bottom rows so flattened tap windows
        # never run off the end), flatten H*W, bf16 matmul stream.
        extra_h = -(-((K - 1) * d) // Wp)
        x_nhwc = jnp.transpose(x, (0, 2, 3, 1))
        x_pad = jnp.pad(x_nhwc, ((0, 0), (p, p + extra_h), (p, p), (0, 0)))
        x_flat = x_pad.reshape(N, (Hp + extra_h) * Wp, C).astype(jnp.bfloat16)

        # Weight: tap-major (K*K*C, OC), fold scale, pad OC to 128n, bf16.
        w2d = jnp.transpose(self.weight, (2, 3, 1, 0)).reshape(K * K * C, OC)
        w2d = w2d * scale[None, :]
        w2d = jnp.pad(w2d, ((0, 0), (0, OCp - OC))).astype(jnp.bfloat16)
        shift_p = jnp.pad(shift, (0, OCp - OC)).reshape(1, OCp).astype(jnp.float32)

        # TODO(synk): for very large feature maps add an output-row grid axis
        # (manual halo DMA); here the whole image is one block per grid step.
        out = _fused_conv2d(x_flat, w2d, shift_p, K=K, dilation=d,
                            Wp=Wp, OH1=OH1, relu=self.relu)

        # (N, OH1*Wp, OCp) -> drop garbage width columns / OC padding -> NCHW.
        out = out.reshape(N, OH1, Wp, OCp)[:, :, :OW1, :OC]
        out = jnp.transpose(out, (0, 3, 1, 2))
        if s > 1:
            out = out[:, :, ::s, ::s]
        return out


# --------------------------------- main --------------------------------------
if __name__ == "__main__":
    key = jax.random.PRNGKey(0)
    kx, kp = jax.random.split(key)

    N, C, H, W = 2, 4, 16, 16
    OC, K = 8, 3

    x = jax.random.normal(kx, (N, C, H, W), jnp.float32)
    module = BasicConv(C, OC, K, stride=1, padding=1, relu=True,
                       bn=False, bias=False, key=kp)

    y = jax.block_until_ready(module(x))
    assert y.shape == (N, OC, H, W)

    # Reference: f32 conv on the same bf16-rounded operands (the kernel streams
    # bf16 into the MXU with f32 accumulation), PyTorch NCHW/OIHW semantics.
    x_bf = x.astype(jnp.bfloat16).astype(jnp.float32)
    w_bf = module.weight.astype(jnp.bfloat16).astype(jnp.float32)
    ref = lax.conv_general_dilated(
        x_bf, w_bf, window_strides=(1, 1), padding=((1, 1), (1, 1)),
        dimension_numbers=("NCHW", "OIHW", "NCHW"),
        precision=lax.Precision.HIGHEST)
    ref = jnp.maximum(ref, 0.0)
    assert jnp.allclose(y, ref, atol=2e-3, rtol=2e-3), \
        float(jnp.max(jnp.abs(y - ref)))

    print("KERNEL_OK")
</pallas_src>

<mosaic_0001>
module attributes {stable_mosaic.version = 11 : i64} {
  func.func @_conv_tap_kernel(%arg0: i32, %arg1: i32, %arg2: memref<1x342x4xbf16, #tpu.memory_space<vmem>>, %arg3: memref<36x128xbf16, #tpu.memory_space<vmem>>, %arg4: memref<1x128xf32, #tpu.memory_space<vmem>>, %arg5: memref<1x288x128xf32, #tpu.memory_space<vmem>>) attributes {dimension_semantics = [#tpu.dimension_semantics<parallel>, #tpu.dimension_semantics<parallel>], iteration_bounds = array<i64: 2, 1>, scalar_prefetch = 0 : i64, scratch_operands = 0 : i64, tpu.core_type = #tpu.core_type<tc>, window_params = [{transform_indices = @transform_0, window_bounds = array<i64: 1, 342, 4>}, {transform_indices = @transform_1, window_bounds = array<i64: 36, 128>}, {transform_indices = @transform_2, window_bounds = array<i64: 1, 128>}, {transform_indices = @transform_3, window_bounds = array<i64: 1, 288, 128>}]} {
    %cst = arith.constant 0.000000e+00 : f32
    %0 = vector.broadcast %cst : f32 to vector<288x128xf32>
    %c0 = arith.constant 0 : index
    %c0_0 = arith.constant 0 : index
    %c0_1 = arith.constant 0 : index
    %1 = vector.load %arg2[%c0, %c0_0, %c0_1] : memref<1x342x4xbf16, #tpu.memory_space<vmem>>, vector<1x288x4xbf16>
    %2 = vector.shape_cast %1 : vector<1x288x4xbf16> to vector<288x4xbf16>
    %c0_2 = arith.constant 0 : index
    %c0_3 = arith.constant 0 : index
    %3 = vector.load %arg3[%c0_2, %c0_3] : memref<36x128xbf16, #tpu.memory_space<vmem>>, vector<4x128xbf16>
    %cst_4 = arith.constant dense<0.000000e+00> : vector<288x128xf32>
    %4 = tpu.matmul %2, %3, %cst_4 {dimension_numbers = #tpu.dot_dimension_numbers<[1], [0], [0], [1], [0, 0, 1, 1], [], []>} : vector<288x4xbf16>, vector<4x128xbf16>, vector<288x128xf32> -> vector<288x128xf32>
    %5 = arith.addf %0, %4 : vector<288x128xf32>
    %c0_5 = arith.constant 0 : index
    %c1 = arith.constant 1 : index
    %c0_6 = arith.constant 0 : index
    %6 = vector.load %arg2[%c0_5, %c1, %c0_6] : memref<1x342x4xbf16, #tpu.memory_space<vmem>>, vector<1x288x4xbf16>
    %7 = vector.shape_cast %6 : vector<1x288x4xbf16> to vector<288x4xbf16>
    %c4 = arith.constant 4 : index
    %c0_7 = arith.constant 0 : index
    %8 = vector.load %arg3[%c4, %c0_7] : memref<36x128xbf16, #tpu.memory_space<vmem>>, vector<4x128xbf16>
    %cst_8 = arith.constant dense<0.000000e+00> : vector<288x128xf32>
    %9 = tpu.matmul %7, %8, %cst_8 {dimension_numbers = #tpu.dot_dimension_numbers<[1], [0], [0], [1], [0, 0, 1, 1], [], []>} : vector<288x4xbf16>, vector<4x128xbf16>, vector<288x128xf32> -> vector<288x128xf32>
    %10 = arith.addf %5, %9 : vector<288x128xf32>
    %c0_9 = arith.constant 0 : index
    %c2 = arith.constant 2 : index
    %c0_10 = arith.constant 0 : index
    %11 = vector.load %arg2[%c0_9, %c2, %c0_10] : memref<1x342x4xbf16, #tpu.memory_space<vmem>>, vector<1x288x4xbf16>
    %12 = vector.shape_cast %11 : vector<1x288x4xbf16> to vector<288x4xbf16>
    %c8 = arith.constant 8 : index
    %c0_11 = arith.constant 0 : index
    %13 = vector.load %arg3[%c8, %c0_11] : memref<36x128xbf16, #tpu.memory_space<vmem>>, vector<4x128xbf16>
    %cst_12 = arith.constant dense<0.000000e+00> : vector<288x128xf32>
    %14 = tpu.matmul %12, %13, %cst_12 {dimension_numbers = #tpu.dot_dimension_numbers<[1], [0], [0], [1], [0, 0, 1, 1], [], []>} : vector<288x4xbf16>, vector<4x128xbf16>, vector<288x128xf32> -> vector<288x128xf32>
    %15 = arith.addf %10, %14 : vector<288x128xf32>
    %c0_13 = arith.constant 0 : index
    %c18 = arith.constant 18 : index
    %c0_14 = arith.constant 0 : index
    %16 = vector.load %arg2[%c0_13, %c18, %c0_14] : memref<1x342x4xbf16, #tpu.memory_space<vmem>>, vector<1x288x4xbf16>
    %17 = vector.shape_cast %16 : vector<1x288x4xbf16> to vector<288x4xbf16>
    %c12 = arith.constant 12 : index
    %c0_15 = arith.constant 0 : index
    %18 = vector.load %arg3[%c12, %c0_15] : memref<36x128xbf16, #tpu.memory_space<vmem>>, vector<4x128xbf16>
    %cst_16 = arith.constant dense<0.000000e+00> : vector<288x128xf32>
    %19 = tpu.matmul %17, %18, %cst_16 {dimension_numbers = #tpu.dot_dimension_numbers<[1], [0], [0], [1], [0, 0, 1, 1], [], []>} : vector<288x4xbf16>, vector<4x128xbf16>, vector<288x128xf32> -> vector<288x128xf32>
    %20 = arith.addf %15, %19 : vector<288x128xf32>
    %c0_17 = arith.constant 0 : index
    %c19 = arith.constant 19 : index
    %c0_18 = arith.constant 0 : index
    %21 = vector.load %arg2[%c0_17, %c19, %c0_18] : memref<1x342x4xbf16, #tpu.memory_space<vmem>>, vector<1x288x4xbf16>
    %22 = vector.shape_cast %21 : vector<1x288x4xbf16> to vector<288x4xbf16>
    %c16 = arith.constant 16 : index
    %c0_19 = arith.constant 0 : index
    %23 = vector.load %arg3[%c16, %c0_19] : memref<36x128xbf16, #tpu.memory_space<vmem>>, vector<4x128xbf16>
    %cst_20 = arith.constant dense<0.000000e+00> : vector<288x128xf32>
    %24 = tpu.matmul %22, %23, %cst_20 {dimension_numbers = #tpu.dot_dimension_numbers<[1], [0], [0], [1], [0, 0, 1, 1], [], []>} : vector<288x4xbf16>, vector<4x128xbf16>, vector<288x128xf32> -> vector<288x128xf32>
    %25 = arith.addf %20, %24 : vector<288x128xf32>
    %c0_21 = arith.constant 0 : index
    %c20 = arith.constant 20 : index
    %c0_22 = arith.constant 0 : index
    %26 = vector.load %arg2[%c0_21, %c20, %c0_22] : memref<1x342x4xbf16, #tpu.memory_space<vmem>>, vector<1x288x4xbf16>
    %27 = vector.shape_cast %26 : vector<1x288x4xbf16> to vector<288x4xbf16>
    %c20_23 = arith.constant 20 : index
    %c0_24 = arith.constant 0 : index
    %28 = vector.load %arg3[%c20_23, %c0_24] : memref<36x128xbf16, #tpu.memory_space<vmem>>, vector<4x128xbf16>
    %cst_25 = arith.constant dense<0.000000e+00> : vector<288x128xf32>
    %29 = tpu.matmul %27, %28, %cst_25 {dimension_numbers = #tpu.dot_dimension_numbers<[1], [0], [0], [1], [0, 0, 1, 1], [], []>} : vector<288x4xbf16>, vector<4x128xbf16>, vector<288x128xf32> -> vector<288x128xf32>
    %30 = arith.addf %25, %29 : vector<288x128xf32>
    %c0_26 = arith.constant 0 : index
    %c36 = arith.constant 36 : index
    %c0_27 = arith.constant 0 : index
    %31 = vector.load %arg2[%c0_26, %c36, %c0_27] : memref<1x342x4xbf16, #tpu.memory_space<vmem>>, vector<1x288x4xbf16>
    %32 = vector.shape_cast %31 : vector<1x288x4xbf16> to vector<288x4xbf16>
    %c24 = arith.constant 24 : index
    %c0_28 = arith.constant 0 : index
    %33 = vector.load %arg3[%c24, %c0_28] : memref<36x128xbf16, #tpu.memory_space<vmem>>, vector<4x128xbf16>
    %cst_29 = arith.constant dense<0.000000e+00> : vector<288x128xf32>
    %34 = tpu.matmul %32, %33, %cst_29 {dimension_numbers = #tpu.dot_dimension_numbers<[1], [0], [0], [1], [0, 0, 1, 1], [], []>} : vector<288x4xbf16>, vector<4x128xbf16>, vector<288x128xf32> -> vector<288x128xf32>
    %35 = arith.addf %30, %34 : vector<288x128xf32>
    %c0_30 = arith.constant 0 : index
    %c37 = arith.constant 37 : index
    %c0_31 = arith.constant 0 : index
    %36 = vector.load %arg2[%c0_30, %c37, %c0_31] : memref<1x342x4xbf16, #tpu.memory_space<vmem>>, vector<1x288x4xbf16>
    %37 = vector.shape_cast %36 : vector<1x288x4xbf16> to vector<288x4xbf16>
    %c28 = arith.constant 28 : index
    %c0_32 = arith.constant 0 : index
    %38 = vector.load %arg3[%c28, %c0_32] : memref<36x128xbf16, #tpu.memory_space<vmem>>, vector<4x128xbf16>
    %cst_33 = arith.constant dense<0.000000e+00> : vector<288x128xf32>
    %39 = tpu.matmul %37, %38, %cst_33 {dimension_numbers = #tpu.dot_dimension_numbers<[1], [0], [0], [1], [0, 0, 1, 1], [], []>} : vector<288x4xbf16>, vector<4x128xbf16>, vector<288x128xf32> -> vector<288x128xf32>
    %40 = arith.addf %35, %39 : vector<288x128xf32>
    %c0_34 = arith.constant 0 : index
    %c38 = arith.constant 38 : index
    %c0_35 = arith.constant 0 : index
    %41 = vector.load %arg2[%c0_34, %c38, %c0_35] : memref<1x342x4xbf16, #tpu.memory_space<vmem>>, vector<1x288x4xbf16>
    %42 = vector.shape_cast %41 : vector<1x288x4xbf16> to vector<288x4xbf16>
    %c32 = arith.constant 32 : index
    %c0_36 = arith.constant 0 : index
    %43 = vector.load %arg3[%c32, %c0_36] : memref<36x128xbf16, #tpu.memory_space<vmem>>, vector<4x128xbf16>
    %cst_37 = arith.constant dense<0.000000e+00> : vector<288x128xf32>
    %44 = tpu.matmul %42, %43, %cst_37 {dimension_numbers = #tpu.dot_dimension_numbers<[1], [0], [0], [1], [0, 0, 1, 1], [], []>} : vector<288x4xbf16>, vector<4x128xbf16>, vector<288x128xf32> -> vector<288x128xf32>
    %45 = arith.addf %40, %44 : vector<288x128xf32>
    %c0_38 = arith.constant 0 : index
    %c0_39 = arith.constant 0 : index
    %46 = vector.load %arg4[%c0_38, %c0_39] : memref<1x128xf32, #tpu.memory_space<vmem>>, vector<1x128xf32>
    %47 = vector.broadcast %46 : vector<1x128xf32> to vector<288x128xf32>
    %48 = arith.addf %45, %47 : vector<288x128xf32>
    %cst_40 = arith.constant 0.000000e+00 : f32
    %49 = vector.broadcast %cst_40 : f32 to vector<288x128xf32>
    %50 = arith.maximumf %48, %49 : vector<288x128xf32>
    %c0_41 = arith.constant 0 : index
    %c0_42 = arith.constant 0 : index
    %c0_43 = arith.constant 0 : index
    %51 = vector.load %arg5[%c0_41, %c0_42, %c0_43] : memref<1x288x128xf32, #tpu.memory_space<vmem>>, vector<1x288x128xf32>
    %52 = vector.shape_cast %51 : vector<1x288x128xf32> to vector<288x128xf32>
    %53 = vector.shape_cast %50 : vector<288x128xf32> to vector<1x288x128xf32>
    tpu.vector_store %arg5[%c0_41, %c0_42, %c0_43], %53 {strides = array<i32>} : memref<1x288x128xf32, #tpu.memory_space<vmem>>, vector<1x288x128xf32>,
    return
  }
  func.func @transform_0(%arg0: i32, %arg1: i32) -> (i32, i32, i32) {
    %c0_i32 = arith.constant 0 : i32
    %c0_i32_0 = arith.constant 0 : i32
    %c0_i32_1 = arith.constant 0 : i32
    return %arg0, %c0_i32, %c0_i32_0 : i32, i32, i32
  }
  func.func @transform_1(%arg0: i32, %arg1: i32) -> (i32, i32) {
    %c0_i32 = arith.constant 0 : i32
    %c0_i32_0 = arith.constant 0 : i32
    return %c0_i32, %arg1 : i32, i32
  }
  func.func @transform_2(%arg0: i32, %arg1: i32) -> (i32, i32) {
    %c0_i32 = arith.constant 0 : i32
    %c0_i32_0 = arith.constant 0 : i32
    return %c0_i32, %arg1 : i32, i32
  }
  func.func @transform_3(%arg0: i32, %arg1: i32) -> (i32, i32, i32) {
    %c0_i32 = arith.constant 0 : i32
    %c0_i32_0 = arith.constant 0 : i32
    return %arg0, %c0_i32, %arg1 : i32, i32, i32
  }
}

</mosaic_0001>

<llo_original>
// kernel: tpu_custom_call.1
$region0: #{tpu_custom_call.1}
  #allocation0 [shape = 'u32[]', space=smem, size = 0x4, offset = 0x4, fixed_abs, tag = 'smem constant byte address 0x4 - core index']
  #allocation1 [shape = 'u32[72,128]{1,0:T(1,128)}', space=vmem, size = 0x9000, scoped, tag = 'internal scratch']
  %s0 = inlined_call_operand.vmem [shape: bf16[2,342,4], index: 0, kind: input, shape index: {}]
  %s1 = inlined_call_operand.vmem [shape: bf16[36,128], index: 1, kind: input, shape index: {}]
  %s2 = inlined_call_operand.vmem [shape: f32[1,128], index: 2, kind: input, shape index: {}]
  %s3 = inlined_call_operand.hbm [shape: f32[2,288,128], index: 3, kind: output, shape index: {}]
  %s4 = sld [smem:[#allocation0]]
  $region45: #{tpu_custom_call.1} parent=0
    _
  %s6 = ssub.s32 1, %s4
  %s7 = scalar_select 0, %s6, %s4
  $region1: #{tpu_custom_call.1} parent=0
    #allocation2 [shape = 'u8[294912]{0}', space=vmem, size = 0x48000, scoped, tag = 'output window, operand 0']
    #allocation3 [shape = 's32[2]{0}', space=sflag, size = 0x8, scoped, tag = 'scoped memory for tpu_custom_call.1']
    %8 = vsyncpa [#allocation3], 0
    %s9 = scalar_lea.sflag [#allocation3], 1
    %10 = vsyncpa %s9, 0
    loop: start=0, step=1, limit=4
    $region2: #{tpu_custom_call.1} parent=1 // loop_pre_header
      _
    $region3: #{tpu_custom_call.1} parent=1 // loop_header
      %s12 = sphi 0, %s16
      %p13 = scmp.ge.s32.totalorder %s12, 4
      %s19 = sphi 0, %s31
      %s20 = sphi 0, %s27
      %s21 = sphi 0, %s19
      %s22 = sphi 0, %s20
      %s23 = sphi 0, %s21
      %s24 = sphi 0, %s22
      %s34 = sphi 0, %s36
      %s37 = sphi 0, %s34
      %s38 = sphi 0, %s37
      %s54 = sphi 0, %s38
      %s60 = sphi 0, %s62
      %s63 = sphi 0, %s60
      %s64 = sphi 0, %s63
      %s80 = sphi 0, %s64
      %s86 = sphi 0, %s88
      %s89 = sphi 0, %s86
      %s90 = sphi 0, %s89
      %s106 = sphi 0, %s90
      %s114 = sphi 0, %s116
      %s117 = sphi 0, %s114
      %s118 = sphi 0, %s117
      %s134 = sphi 0, %s118
    $region4: #{tpu_custom_call.1} parent=1 // loop_header_branch
      %15 = sbr.rel (%p13) target = $region8
    $region5: #{tpu_custom_call.1} parent=1 // loop_body
      %s17 = ssub.s32 %s12, 1
      %s18 = ssub.s32 %s12, 2
      %s25 = sadd.s32 1, %s20
      %p26 = scmp.ge.s32.totalorder %s25, 1
      %s27 = scalar_select %p26, 0, %s25
      %s28 = sadd.s32 1, %s19
      %s29 = scalar_select %p26, %s28, %s19
      %p30 = scmp.ge.s32.totalorder %s29, 2
      %s31 = scalar_select %p30, 0, %s29
      %s32 = ssub.s32 %s19, %s31
      %p33 = scmp.eq.s32.totalorder %s32, 0
      %s35 = sadd.s32 %s34, 1
      %s36 = scalar_select %p33, %s34, %s35
      %p39 = pneg %p33
      %p40 = scmp.eq.s32.totalorder %s12, 1
      %p41 = por %p39, %p40
      %p42 = scmp.ne.s32.totalorder %s34, %s37
      %p43 = scmp.eq.s32.totalorder %s12, 0
      %p44 = por %p42, %p43
      %p45 = scmp.ne.s32.totalorder %s34, %s37
      %p46 = scmp.eq.s32.totalorder %s17, 1
      %p47 = por %p45, %p46
      %p48 = scmp.ne.s32.totalorder %s37, %s38
      %p49 = scmp.eq.s32.totalorder %s17, 0
      %p50 = por %p48, %p49
      %p51 = scmp.ne.s32.totalorder %s37, %s38
      %p52 = scmp.eq.s32.totalorder %s18, 1
      %p53 = por %p51, %p52
      %p55 = scmp.ne.s32.totalorder %s38, %s54
      %p56 = scmp.eq.s32.totalorder %s18, 0
      %p57 = por %p55, %p56
      %s58 = ssub.s32 %s20, %s27
      %p59 = scmp.eq.s32.totalorder %s58, 0
      %s61 = sadd.s32 %s60, 1
      %s62 = scalar_select %p59, %s60, %s61
      %p65 = pneg %p59
      %p66 = scmp.eq.s32.totalorder %s12, 1
      %p67 = por %p65, %p66
      %p68 = scmp.ne.s32.totalorder %s60, %s63
      %p69 = scmp.eq.s32.totalorder %s12, 0
      %p70 = por %p68, %p69
      %p71 = scmp.ne.s32.totalorder %s60, %s63
      %p72 = scmp.eq.s32.totalorder %s17, 1
      %p73 = por %p71, %p72
      %p74 = scmp.ne.s32.totalorder %s63, %s64
      %p75 = scmp.eq.s32.totalorder %s17, 0
      %p76 = por %p74, %p75
      %p77 = scmp.ne.s32.totalorder %s63, %s64
      %p78 = scmp.eq.s32.totalorder %s18, 1
      %p79 = por %p77, %p78
      %p81 = scmp.ne.s32.totalorder %s64, %s80
      %p82 = scmp.eq.s32.totalorder %s18, 0
      %p83 = por %p81, %p82
      %s84 = ssub.s32 %s20, %s27
      %p85 = scmp.eq.s32.totalorder %s84, 0
      %s87 = sadd.s32 %s86, 1
      %s88 = scalar_select %p85, %s86, %s87
      %p91 = pneg %p85
      %p92 = scmp.eq.s32.totalorder %s12, 1
      %p93 = por %p91, %p92
      %p94 = scmp.ne.s32.totalorder %s86, %s89
      %p95 = scmp.eq.s32.totalorder %s12, 0
      %p96 = por %p94, %p95
      %p97 = scmp.ne.s32.totalorder %s86, %s89
      %p98 = scmp.eq.s32.totalorder %s17, 1
      %p99 = por %p97, %p98
      %p100 = scmp.ne.s32.totalorder %s89, %s90
      %p101 = scmp.eq.s32.totalorder %s17, 0
      %p102 = por %p100, %p101
      %p103 = scmp.ne.s32.totalorder %s89, %s90
      %p104 = scmp.eq.s32.totalorder %s18, 1
      %p105 = por %p103, %p104
      %p107 = scmp.ne.s32.totalorder %s90, %s106
      %p108 = scmp.eq.s32.totalorder %s18, 0
      %p109 = por %p107, %p108
      %s110 = ssub.s32 %s19, %s31
      %s111 = ssub.s32 %s20, %s27
      %s112 = sor.u32 %s110, %s111
      %p113 = scmp.eq.s32.totalorder %s112, 0
      %s115 = sadd.s32 %s114, 1
      %s116 = scalar_select %p113, %s114, %s115
      %p119 = pneg %p113
      %p120 = scmp.eq.s32.totalorder %s12, 1
      %p121 = por %p119, %p120
      %p122 = scmp.ne.s32.totalorder %s114, %s117
      %p123 = scmp.eq.s32.totalorder %s12, 0
      %p124 = por %p122, %p123
      %p125 = scmp.ne.s32.totalorder %s114, %s117
      %p126 = scmp.eq.s32.totalorder %s17, 1
      %p127 = por %p125, %p126
      %p128 = scmp.ne.s32.totalorder %s117, %s118
      %p129 = scmp.eq.s32.totalorder %s17, 0
      %p130 = por %p128, %p129
      %p131 = scmp.ne.s32.totalorder %s117, %s118
      %p132 = scmp.eq.s32.totalorder %s18, 1
      %p133 = por %p131, %p132
      %p135 = scmp.ne.s32.totalorder %s118, %s134
      %p136 = scmp.eq.s32.totalorder %s18, 0
      %p137 = por %p135, %p136
      %p138 = scmp.le.s32.totalorder 1, %s12
      %p139 = scmp.lt.s32.totalorder %s12, 3
      %p140 = pnand %p138, %p139
      %p141 = pneg %p140
      // Predicated region
      $region9: #{tpu_custom_call.1} parent=5 // pred_check
        _
      $region10: #{tpu_custom_call.1} parent=5 // pred_check_branch
        %143 = sbr.rel (%p140) target = $region12
      $region11: #{tpu_custom_call.1} parent=5 // pred_region
        %s144 = ssub.s32 %s12, 1
        // Predicated region
        $region13: #{tpu_custom_call.1} parent=11 // pred_check
          %p145 = pneg %p76
        $region14: #{tpu_custom_call.1} parent=11 // pred_check_branch
          %147 = sbr.rel (%p145) target = $region16
        $region15: #{tpu_custom_call.1} parent=11 // pred_region
          %p148 = scmp.lt.s32.totalorder %s22, 0
          %s149 = scalar_select %p148, %s22, 0
          %s150 = smul.addr %s149, 4
          %s151 = scalar_lea.vmem %s1, %s150
        $region16: #{tpu_custom_call.1} parent=11 // pred_fallthru
          _
        // Predicated region
        $region17: #{tpu_custom_call.1} parent=11 // pred_check
          %p152 = pneg %p102
        $region18: #{tpu_custom_call.1} parent=11 // pred_check_branch
          %154 = sbr.rel (%p152) target = $region20
        $region19: #{tpu_custom_call.1} parent=11 // pred_region
          %p155 = scmp.lt.s32.totalorder %s22, 0
          %s156 = scalar_select %p155, %s22, 0
          %s157 = scalar_lea.vmem %s2, %s156
        $region20: #{tpu_custom_call.1} parent=11 // pred_fallthru
          _
      $region12: #{tpu_custom_call.1} parent=5 // pred_fallthru
        _
      %p158 = scmp.lt.s32.totalorder %s12, 2
      // Predicated region
      $region21: #{tpu_custom_call.1} parent=5 // pred_check
        %p159 = pneg %p158
      $region22: #{tpu_custom_call.1} parent=5 // pred_check_branch
        %161 = sbr.rel (%p159) target = $region24
      $region23: #{tpu_custom_call.1} parent=5 // pred_region
        // Predicated region
        $region25: #{tpu_custom_call.1} parent=23 // pred_check
          %p162 = pneg %p44
        $region26: #{tpu_custom_call.1} parent=23 // pred_check_branch
          %164 = sbr.rel (%p162) target = $region28
        $region27: #{tpu_custom_call.1} parent=23 // pred_region
          %p165 = scmp.lt.s32.totalorder %s19, 1
          %s166 = scalar_select %p165, %s19, 1
          %s167 = smul.addr %s166, 43
          %s168 = smul.addr %s167, 4
          %s169 = scalar_lea.vmem %s0, %s168
        $region28: #{tpu_custom_call.1} parent=23 // pred_fallthru
          _
      $region24: #{tpu_custom_call.1} parent=5 // pred_fallthru
        _
      %p170 = scmp.le.s32.totalorder 1, %s12
      %p171 = scmp.lt.s32.totalorder %s12, 3
      %p172 = pnand %p170, %p171
      %p173 = pneg %p172
      // Predicated region
      $region29: #{tpu_custom_call.1} parent=5 // pred_check
        _
      $region30: #{tpu_custom_call.1} parent=5 // pred_check_branch
        %175 = sbr.rel (%p172) target = $region32
      $region31: #{tpu_custom_call.1} parent=5 // pred_region
        %s176 = ssub.s32 %s12, 1
        %p177 = scmp.lt.s32.totalorder %s21, 1
        %s178 = scalar_select %p177, %s21, 1
        %s179 = smul.addr %s178, 43
        %s180 = smul.addr %s179, 4
        %s181 = scalar_lea.vmem %s0, %s180
        %p182 = pneg %p50
        %p183 = pneg %p47
        %p184 = scmp.lt.s32.totalorder %s22, 0
        %s185 = scalar_select %p184, %s22, 0
        %s186 = smul.addr %s185, 4
        %s187 = scalar_lea.vmem %s1, %s186
        %p188 = pneg %p76
        %p189 = pneg %p73
        %p190 = scmp.lt.s32.totalorder %s22, 0
        %s191 = scalar_select %p190, %s22, 0
        %s192 = scalar_lea.vmem %s2, %s191
        %p193 = pneg %p102
        %p194 = pneg %p99
        %p195 = pneg %p130
        %p196 = pneg %p127
        %s197 = sand.u32 %s117, 1
        %s198 = scalar_lea.sflag [#allocation3], %s197
        %s199 = sand.u32 %s117, 1
        %s200 = smul.addr %s199, 288
        %s201 = scalar_lea.vmem [#allocation2], %s200
        %p202 = scmp.lt.s32.totalorder %s21, 1
        %s203 = scalar_select %p202, %s21, 1
        %s204 = smul.addr %s203, 43
        %s205 = smul.addr %s204, 4
        %s206 = scalar_lea.vmem %s0, %s205
        %p207 = scmp.lt.s32.totalorder %s22, 0
        %s208 = scalar_select %p207, %s22, 0
        %s209 = smul.addr %s208, 4
        %s210 = scalar_lea.vmem %s1, %s209
        %p211 = scmp.lt.s32.totalorder %s22, 0
        %s212 = scalar_select %p211, %s22, 0
        %s213 = scalar_lea.vmem %s2, %s212
        %v215 = vld [vmem:[%s206] sm:$0xf]
        %v216 = vld [vmem:[%s206 + $0x4] sm:$0xf]
        %v217 = vld [vmem:[%s206 + $0x8] sm:$0xf]
        %v218 = vld [vmem:[%s206 + $0xc] sm:$0xf]
        %v219 = vld [vmem:[%s206 + $0x10] sm:$0xf]
        %v220 = vld [vmem:[%s206 + $0x14] sm:$0xf]
        %v221 = vld [vmem:[%s206 + $0x18] sm:$0xf]
        %v222 = vld [vmem:[%s206 + $0x1c] sm:$0xf]
        %v223 = vld [vmem:[%s206 + $0x20] sm:$0xf]
        %v224 = vld [vmem:[%s206 + $0x24] sm:$0xf]
        %v225 = vld [vmem:[%s206 + $0x28] sm:$0xf]
        %v226 = vld [vmem:[%s206 + $0x2c] sm:$0xf]
        %v227 = vld [vmem:[%s206 + $0x30] sm:$0xf]
        %v228 = vld [vmem:[%s206 + $0x34] sm:$0xf]
        %v229 = vld [vmem:[%s206 + $0x38] sm:$0xf]
        %v230 = vld [vmem:[%s206 + $0x3c] sm:$0xf]
        %v231 = vld [vmem:[%s206 + $0x40] sm:$0xf]
        %v232 = vld [vmem:[%s206 + $0x44] sm:$0xf]
        %v233 = vld [vmem:[%s206 + $0x48] sm:$0xf]
        %v234 = vld [vmem:[%s206 + $0x4c] sm:$0xf]
        %v235 = vld [vmem:[%s206 + $0x50] sm:$0xf]
        %v236 = vld [vmem:[%s206 + $0x54] sm:$0xf]
        %v237 = vld [vmem:[%s206 + $0x58] sm:$0xf]
        %v238 = vld [vmem:[%s206 + $0x5c] sm:$0xf]
        %v239 = vld [vmem:[%s206 + $0x60] sm:$0xf]
        %v240 = vld [vmem:[%s206 + $0x64] sm:$0xf]
        %v241 = vld [vmem:[%s206 + $0x68] sm:$0xf]
        %v242 = vld [vmem:[%s206 + $0x6c] sm:$0xf]
        %v243 = vld [vmem:[%s206 + $0x70] sm:$0xf]
        %v244 = vld [vmem:[%s206 + $0x74] sm:$0xf]
        %v245 = vld [vmem:[%s206 + $0x78] sm:$0xf]
        %v246 = vld [vmem:[%s206 + $0x7c] sm:$0xf]
        %v247 = vld [vmem:[%s206 + $0x80] sm:$0xf]
        %v248 = vld [vmem:[%s206 + $0x84] sm:$0xf]
        %v249 = vld [vmem:[%s206 + $0x88] sm:$0xf]
        %v250 = vld [vmem:[%s206 + $0x8c] sm:$0xf]
        %v251 = vld [vmem:[%s210] sm:$0x3]
        %v252 = vld [vmem:[%s206 + $0x90] sm:$0x1]
        %v253 = vld [vmem:[%s210] sm:$0xc]
        %v291 = vunpack.c.l.b16 %v215
        %v292 = vunpack.c.l.b16 %v216
        %v293 = vunpack.c.l.b16 %v217
        %v294 = vunpack.c.l.b16 %v218
        %v295 = vunpack.c.l.b16 %v219
        %v296 = vunpack.c.l.b16 %v220
        %v297 = vunpack.c.l.b16 %v221
        %v298 = vunpack.c.l.b16 %v222
        %v299 = vunpack.c.l.b16 %v223
        %v300 = vunpack.c.l.b16 %v224
        %v301 = vunpack.c.l.b16 %v225
        %v302 = vunpack.c.l.b16 %v226
        %v303 = vunpack.c.l.b16 %v227
        %v304 = vunpack.c.l.b16 %v228
        %v305 = vunpack.c.l.b16 %v229
        %v306 = vunpack.c.l.b16 %v230
        %v307 = vunpack.c.l.b16 %v231
        %v308 = vunpack.c.l.b16 %v232
        %v309 = vunpack.c.l.b16 %v233
        %v310 = vunpack.c.l.b16 %v234
        %v311 = vunpack.c.l.b16 %v235
        %v312 = vunpack.c.l.b16 %v236
        %v313 = vunpack.c.l.b16 %v237
        %v314 = vunpack.c.l.b16 %v238
        %v315 = vunpack.c.l.b16 %v239
        %v316 = vunpack.c.l.b16 %v240
        %v317 = vunpack.c.l.b16 %v241
        %v318 = vunpack.c.l.b16 %v242
        %v319 = vunpack.c.l.b16 %v243
        %v320 = vunpack.c.l.b16 %v244
        %v321 = vunpack.c.l.b16 %v245
        %v322 = vunpack.c.l.b16 %v246
        %v323 = vunpack.c.l.b16 %v247
        %v324 = vunpack.c.l.b16 %v248
        %v325 = vunpack.c.l.b16 %v249
        %v326 = vunpack.c.l.b16 %v250
        %v327 = vunpack.c.l.b16 %v252
        %v328 = vpack.c.b16 %v292, %v291
        %v329 = vpack.c.b16 %v294, %v293
        %v330 = vpack.c.b16 %v296, %v295
        %v331 = vpack.c.b16 %v298, %v297
        %v332 = vpack.c.b16 %v300, %v299
        %v333 = vpack.c.b16 %v302, %v301
        %v334 = vpack.c.b16 %v304, %v303
        %v335 = vpack.c.b16 %v306, %v305
        %v336 = vpack.c.b16 %v308, %v307
        %v337 = vpack.c.b16 %v310, %v309
        %v338 = vpack.c.b16 %v312, %v311
        %v339 = vpack.c.b16 %v314, %v313
        %v340 = vpack.c.b16 %v316, %v315
        %v341 = vpack.c.b16 %v318, %v317
        %v342 = vpack.c.b16 %v320, %v319
        %v343 = vpack.c.b16 %v322, %v321
        %v344 = vpack.c.b16 %v324, %v323
        %v345 = vpack.c.b16 %v326, %v325
        %v346 = vpack.c.b16 %v327, %v327
        %vm347 = vsmask.f32 7424
        %v349 = vshrl.u32 %v328, 16
        %v351 = vshll.u32 %v328, 16
        %v353 = vrot.slane %v351, 1
        %v354 = vor.u32 %v349, %v353
        %v356 = vshll.u32 %v329, 16
        %v358 = vrot.slane %v356, 1
        %v359 = vsel %vm347, %v354, %v358
        %v360 = vshrl.u32 %v329, 16
        %v362 = vor.u32 %v360, %v358
        %v364 = vshll.u32 %v330, 16
        %v366 = vrot.slane %v364, 1
        %v367 = vsel %vm347, %v362, %v366
        %v368 = vshrl.u32 %v330, 16
        %v370 = vor.u32 %v368, %v366
        %v372 = vshll.u32 %v331, 16
        %v374 = vrot.slane %v372, 1
        %v375 = vsel %vm347, %v370, %v374
        %v376 = vshrl.u32 %v331, 16
        %v378 = vor.u32 %v376, %v374
        %v380 = vshll.u32 %v332, 16
        %v382 = vrot.slane %v380, 1
        %v383 = vsel %vm347, %v378, %v382
        %v384 = vshrl.u32 %v332, 16
        %v386 = vor.u32 %v384, %v382
        %v388 = vshll.u32 %v333, 16
        %v390 = vrot.slane %v388, 1
        %v391 = vsel %vm347, %v386, %v390
        %v392 = vshrl.u32 %v333, 16
        %v394 = vor.u32 %v392, %v390
        %v396 = vshll.u32 %v334, 16
        %v398 = vrot.slane %v396, 1
        %v399 = vsel %vm347, %v394, %v398
        %v400 = vshrl.u32 %v334, 16
        %v402 = vor.u32 %v400, %v398
        %v404 = vshll.u32 %v335, 16
        %v406 = vrot.slane %v404, 1
        %v407 = vsel %vm347, %v402, %v406
        %v408 = vshrl.u32 %v335, 16
        %v410 = vor.u32 %v408, %v406
        %v412 = vshll.u32 %v336, 16
        %v414 = vrot.slane %v412, 1
        %v415 = vsel %vm347, %v410, %v414
        %v416 = vshrl.u32 %v336, 16
        %v418 = vor.u32 %v416, %v414
        %v420 = vshll.u32 %v337, 16
        %v422 = vrot.slane %v420, 1
        %v423 = vsel %vm347, %v418, %v422
        %v424 = vshrl.u32 %v337, 16
        %v426 = vor.u32 %v424, %v422
        %v428 = vshll.u32 %v338, 16
        %v430 = vrot.slane %v428, 1
        %v431 = vsel %vm347, %v426, %v430
        %v432 = vshrl.u32 %v338, 16
        %v434 = vor.u32 %v432, %v430
        %v436 = vshll.u32 %v339, 16
        %v438 = vrot.slane %v436, 1
        %v439 = vsel %vm347, %v434, %v438
        %v440 = vshrl.u32 %v339, 16
        %v442 = vor.u32 %v440, %v438
        %v444 = vshll.u32 %v340, 16
        %v446 = vrot.slane %v444, 1
        %v447 = vsel %vm347, %v442, %v446
        %v448 = vshrl.u32 %v340, 16
        %v450 = vor.u32 %v448, %v446
        %v452 = vshll.u32 %v341, 16
        %v454 = vrot.slane %v452, 1
        %v455 = vsel %vm347, %v450, %v454
        %v456 = vshrl.u32 %v341, 16
        %v458 = vor.u32 %v456, %v454
        %v460 = vshll.u32 %v342, 16
        %v462 = vrot.slane %v460, 1
        %v463 = vsel %vm347, %v458, %v462
        %v464 = vshrl.u32 %v342, 16
        %v466 = vor.u32 %v464, %v462
        %v468 = vshll.u32 %v343, 16
        %v470 = vrot.slane %v468, 1
        %v471 = vsel %vm347, %v466, %v470
        %v472 = vshrl.u32 %v343, 16
        %v474 = vor.u32 %v472, %v470
        %v476 = vshll.u32 %v344, 16
        %v478 = vrot.slane %v476, 1
        %v479 = vsel %vm347, %v474, %v478
        %v480 = vshrl.u32 %v344, 16
        %v482 = vor.u32 %v480, %v478
        %v484 = vshll.u32 %v345, 16
        %v486 = vrot.slane %v484, 1
        %v487 = vsel %vm347, %v482, %v486
        %v488 = vshrl.u32 %v345, 16
        %v490 = vor.u32 %v488, %v486
        %v492 = vshll.u32 %v346, 16
        %v494 = vrot.slane %v492, 1
        %v495 = vsel %vm347, %v490, %v494
        %v497 = vunpack.c.l.b16 %v253
        %v498 = vpack.c.b16 %v497, %v497
        %v499 = vrot.slane %v498, 2
        %vm500 = vcmask 31744
        %v502 = vsel %vm500, %v359, 0
        %v505 = vsel %vm500, %v367, 0
        %v508 = vsel %vm500, %v375, 0
        %v511 = vsel %vm500, %v383, 0
        %v514 = vsel %vm500, %v391, 0
        %v517 = vsel %vm500, %v399, 0
        %v520 = vsel %vm500, %v407, 0
        %v523 = vsel %vm500, %v415, 0
        %v526 = vsel %vm500, %v423, 0
        %v529 = vsel %vm500, %v431, 0
        %v532 = vsel %vm500, %v439, 0
        %v535 = vsel %vm500, %v447, 0
        %v538 = vsel %vm500, %v455, 0
        %v541 = vsel %vm500, %v463, 0
        %v544 = vsel %vm500, %v471, 0
        %v547 = vsel %vm500, %v479, 0
        %v550 = vsel %vm500, %v487, 0
        %v553 = vsel %vm500, %v495, 0
        %vm555 = vcmask 1041408
        %v557 = vsel %vm555, %v499, 0
        %559 = vmatpush.bf16.msra.mxu0 0
        %560 = vmatpush.bf16.msra.mxu0 0
        %561 = vmatpush.bf16.msra.mxu0 0
        %562 = vmatpush.bf16.msra.mxu0 0
        %563 = vmatpush.bf16.msra.mxu0 0
        %564 = vmatpush.bf16.msra.mxu0 0
        %565 = vmatpush.bf16.msra.mxu0 0
        %566 = vmatpush.bf16.msra.mxu0 %v557
        %567 = vmatmul.bf16.gmra.mxu0 %v502
        %v568 = vpop.f32.mrf.mxu0
        %v569 = vadd.f32 0.0, %v568
        %v570 = vpop.f32.mrf.mxu0
        %v571 = vadd.f32 0.0, %v570
        %572 = vmatmul.bf16.gmra.mxu0 %v505
        %v573 = vpop.f32.mrf.mxu0
        %v574 = vadd.f32 0.0, %v573
        %v575 = vpop.f32.mrf.mxu0
        %v576 = vadd.f32 0.0, %v575
        %577 = vmatmul.bf16.gmra.mxu0 %v508
        %v578 = vpop.f32.mrf.mxu0
        %v579 = vadd.f32 0.0, %v578
        %v580 = vpop.f32.mrf.mxu0
        %v581 = vadd.f32 0.0, %v580
        %582 = vmatmul.bf16.gmra.mxu0 %v511
        %v583 = vpop.f32.mrf.mxu0
        %v584 = vadd.f32 0.0, %v583
        %v585 = vpop.f32.mrf.mxu0
        %v586 = vadd.f32 0.0, %v585
        %587 = vmatmul.bf16.gmra.mxu0 %v514
        %v588 = vpop.f32.mrf.mxu0
        %v589 = vadd.f32 0.0, %v588
        %v590 = vpop.f32.mrf.mxu0
        %v591 = vadd.f32 0.0, %v590
        %592 = vmatmul.bf16.gmra.mxu0 %v517
        %v593 = vpop.f32.mrf.mxu0
        %v594 = vadd.f32 0.0, %v593
        %v595 = vpop.f32.mrf.mxu0
        %v596 = vadd.f32 0.0, %v595
        %597 = vmatmul.bf16.gmra.mxu0 %v520
        %v598 = vpop.f32.mrf.mxu0
        %v599 = vadd.f32 0.0, %v598
        %v600 = vpop.f32.mrf.mxu0
        %v601 = vadd.f32 0.0, %v600
        %602 = vmatmul.bf16.gmra.mxu0 %v523
        %v603 = vpop.f32.mrf.mxu0
        %v604 = vadd.f32 0.0, %v603
        %v605 = vpop.f32.mrf.mxu0
        %v606 = vadd.f32 0.0, %v605
        %607 = vmatmul.bf16.gmra.mxu0 %v526
        %v608 = vpop.f32.mrf.mxu0
        %v609 = vadd.f32 0.0, %v608
        %v610 = vpop.f32.mrf.mxu0
        %v611 = vadd.f32 0.0, %v610
        %612 = vmatmul.bf16.gmra.mxu0 %v529
        %v613 = vpop.f32.mrf.mxu0
        %v614 = vadd.f32 0.0, %v613
        %v615 = vpop.f32.mrf.mxu0
        %v616 = vadd.f32 0.0, %v615
        %617 = vmatmul.bf16.gmra.mxu0 %v532
        %v618 = vpop.f32.mrf.mxu0
        %v619 = vadd.f32 0.0, %v618
        %v620 = vpop.f32.mrf.mxu0
        %v621 = vadd.f32 0.0, %v620
        %622 = vmatmul.bf16.gmra.mxu0 %v535
        %v623 = vpop.f32.mrf.mxu0
        %v624 = vadd.f32 0.0, %v623
        %v625 = vpop.f32.mrf.mxu0
        %v626 = vadd.f32 0.0, %v625
        %627 = vmatmul.bf16.gmra.mxu0 %v538
        %v628 = vpop.f32.mrf.mxu0
        %v629 = vadd.f32 0.0, %v628
        %v630 = vpop.f32.mrf.mxu0
        %v631 = vadd.f32 0.0, %v630
        %632 = vmatmul.bf16.gmra.mxu0 %v541
        %v633 = vpop.f32.mrf.mxu0
        %v634 = vadd.f32 0.0, %v633
        %v635 = vpop.f32.mrf.mxu0
        %v636 = vadd.f32 0.0, %v635
        %637 = vmatmul.bf16.gmra.mxu0 %v544
        %v638 = vpop.f32.mrf.mxu0
        %v639 = vadd.f32 0.0, %v638
        %v640 = vpop.f32.mrf.mxu0
        %v641 = vadd.f32 0.0, %v640
        %642 = vmatmul.bf16.gmra.mxu0 %v547
        %v643 = vpop.f32.mrf.mxu0
        %v644 = vadd.f32 0.0, %v643
        %v645 = vpop.f32.mrf.mxu0
        %v646 = vadd.f32 0.0, %v645
        %647 = vmatmul.bf16.gmra.mxu0 %v550
        %v648 = vpop.f32.mrf.mxu0
        %v649 = vadd.f32 0.0, %v648
        %v650 = vpop.f32.mrf.mxu0
        %v651 = vadd.f32 0.0, %v650
        %652 = vmatmul.bf16.gmra.mxu0 %v553
        %v653 = vpop.f32.mrf.mxu0
        %v654 = vadd.f32 0.0, %v653
        %v655 = vpop.f32.mrf.mxu0
        %v656 = vadd.f32 0.0, %v655
        %657 = vdwg.mxu0
        %v658 = vsel %vm500, %v328, 0
        %v660 = vsel %vm500, %v329, 0
        %v662 = vsel %vm500, %v330, 0
        %v664 = vsel %vm500, %v331, 0
        %v666 = vsel %vm500, %v332, 0
        %v668 = vsel %vm500, %v333, 0
        %v670 = vsel %vm500, %v334, 0
        %v672 = vsel %vm500, %v335, 0
        %v674 = vsel %vm500, %v336, 0
        %v676 = vsel %vm500, %v337, 0
        %v678 = vsel %vm500, %v338, 0
        %v680 = vsel %vm500, %v339, 0
        %v682 = vsel %vm500, %v340, 0
        %v684 = vsel %vm500, %v341, 0
        %v686 = vsel %vm500, %v342, 0
        %v688 = vsel %vm500, %v343, 0
        %v690 = vsel %vm500, %v344, 0
        %v692 = vsel %vm500, %v345, 0
        %v695 = vsel %vm555, %v251, 0
        %697 = vmatpush.bf16.msra.mxu0 0
        %698 = vmatpush.bf16.msra.mxu0 0
        %699 = vmatpush.bf16.msra.mxu0 0
        %700 = vmatpush.bf16.msra.mxu0 0
        %701 = vmatpush.bf16.msra.mxu0 0
        %702 = vmatpush.bf16.msra.mxu0 0
        %703 = vmatpush.bf16.msra.mxu0 0
        %704 = vmatpush.bf16.msra.mxu0 %v695
        %705 = vmatmul.bf16.gmra.mxu0 %v658
        %v706 = vpop.f32.mrf.mxu0
        %v707 = vadd.f32 %v569, %v706
        %v708 = vpop.f32.mrf.mxu0
        %v709 = vadd.f32 %v571, %v708
        %710 = vmatmul.bf16.gmra.mxu0 %v660
        %v711 = vpop.f32.mrf.mxu0
        %v712 = vadd.f32 %v574, %v711
        %v713 = vpop.f32.mrf.mxu0
        %v714 = vadd.f32 %v576, %v713
        %715 = vmatmul.bf16.gmra.mxu0 %v662
        %v716 = vpop.f32.mrf.mxu0
        %v717 = vadd.f32 %v579, %v716
        %v718 = vpop.f32.mrf.mxu0
        %v719 = vadd.f32 %v581, %v718
        %720 = vmatmul.bf16.gmra.mxu0 %v664
        %v721 = vpop.f32.mrf.mxu0
        %v722 = vadd.f32 %v584, %v721
        %v723 = vpop.f32.mrf.mxu0
        %v724 = vadd.f32 %v586, %v723
        %725 = vmatmul.bf16.gmra.mxu0 %v666
        %v726 = vpop.f32.mrf.mxu0
        %v727 = vadd.f32 %v589, %v726
        %v728 = vpop.f32.mrf.mxu0
        %v729 = vadd.f32 %v591, %v728
        %730 = vmatmul.bf16.gmra.mxu0 %v668
        %v731 = vpop.f32.mrf.mxu0
        %v732 = vadd.f32 %v594, %v731
        %v733 = vpop.f32.mrf.mxu0
        %v734 = vadd.f32 %v596, %v733
        %735 = vmatmul.bf16.gmra.mxu0 %v670
        %v736 = vpop.f32.mrf.mxu0
        %v737 = vadd.f32 %v599, %v736
        %v738 = vpop.f32.mrf.mxu0
        %v739 = vadd.f32 %v601, %v738
        %740 = vmatmul.bf16.gmra.mxu0 %v672
        %v741 = vpop.f32.mrf.mxu0
        %v742 = vadd.f32 %v604, %v741
        %v743 = vpop.f32.mrf.mxu0
        %v744 = vadd.f32 %v606, %v743
        %745 = vmatmul.bf16.gmra.mxu0 %v674
        %v746 = vpop.f32.mrf.mxu0
        %v747 = vadd.f32 %v609, %v746
        %v748 = vpop.f32.mrf.mxu0
        %v749 = vadd.f32 %v611, %v748
        %750 = vmatmul.bf16.gmra.mxu0 %v676
        %v751 = vpop.f32.mrf.mxu0
        %v752 = vadd.f32 %v614, %v751
        %v753 = vpop.f32.mrf.mxu0
        %v754 = vadd.f32 %v616, %v753
        %755 = vmatmul.bf16.gmra.mxu0 %v678
        %v756 = vpop.f32.mrf.mxu0
        %v757 = vadd.f32 %v619, %v756
        %v758 = vpop.f32.mrf.mxu0
        %v759 = vadd.f32 %v621, %v758
        %760 = vmatmul.bf16.gmra.mxu0 %v680
        %v761 = vpop.f32.mrf.mxu0
        %v762 = vadd.f32 %v624, %v761
        %v763 = vpop.f32.mrf.mxu0
        %v764 = vadd.f32 %v626, %v763
        %765 = vmatmul.bf16.gmra.mxu0 %v682
        %v766 = vpop.f32.mrf.mxu0
        %v767 = vadd.f32 %v629, %v766
        %v768 = vpop.f32.mrf.mxu0
        %v769 = vadd.f32 %v631, %v768
        %770 = vmatmul.bf16.gmra.mxu0 %v684
        %v771 = vpop.f32.mrf.mxu0
        %v772 = vadd.f32 %v634, %v771
        %v773 = vpop.f32.mrf.mxu0
        %v774 = vadd.f32 %v636, %v773
        %775 = vmatmul.bf16.gmra.mxu0 %v686
        %v776 = vpop.f32.mrf.mxu0
        %v777 = vadd.f32 %v639, %v776
        %v778 = vpop.f32.mrf.mxu0
        %v779 = vadd.f32 %v641, %v778
        %780 = vmatmul.bf16.gmra.mxu0 %v688
        %v781 = vpop.f32.mrf.mxu0
        %v782 = vadd.f32 %v644, %v781
        %v783 = vpop.f32.mrf.mxu0
        %v784 = vadd.f32 %v646, %v783
        %785 = vmatmul.bf16.gmra.mxu0 %v690
        %v786 = vpop.f32.mrf.mxu0
        %v787 = vadd.f32 %v649, %v786
        %v788 = vpop.f32.mrf.mxu0
        %v789 = vadd.f32 %v651, %v788
        %790 = vmatmul.bf16.gmra.mxu0 %v692
        %v791 = vpop.f32.mrf.mxu0
        %v792 = vadd.f32 %v654, %v791
        %v793 = vpop.f32.mrf.mxu0
        %v794 = vadd.f32 %v656, %v793
        %795 = vdwg.mxu0
        %v796 = vld [vmem:[%s206] sm:$0xe]
        %v797 = vld [vmem:[%s210 + $0x4] sm:$0x3]
        %v799 = vunpack.c.l.b16 %v796
        %v800 = vpack.c.b16 %v292, %v799
        %vm801 = vcmask 1046528
        %v802 = vrot.slane %v800, 1
        %v803 = vrot.slane %v329, 1
        %v804 = vsel %vm801, %v802, %v803
        %v805 = vrot.slane %v330, 1
        %v806 = vsel %vm801, %v803, %v805
        %v807 = vrot.slane %v331, 1
        %v808 = vsel %vm801, %v805, %v807
        %v809 = vrot.slane %v332, 1
        %v810 = vsel %vm801, %v807, %v809
        %v811 = vrot.slane %v333, 1
        %v812 = vsel %vm801, %v809, %v811
        %v813 = vrot.slane %v334, 1
        %v814 = vsel %vm801, %v811, %v813
        %v815 = vrot.slane %v335, 1
        %v816 = vsel %vm801, %v813, %v815
        %v817 = vrot.slane %v336, 1
        %v818 = vsel %vm801, %v815, %v817
        %v819 = vrot.slane %v337, 1
        %v820 = vsel %vm801, %v817, %v819
        %v821 = vrot.slane %v338, 1
        %v822 = vsel %vm801, %v819, %v821
        %v823 = vrot.slane %v339, 1
        %v824 = vsel %vm801, %v821, %v823
        %v825 = vrot.slane %v340, 1
        %v826 = vsel %vm801, %v823, %v825
        %v827 = vrot.slane %v341, 1
        %v828 = vsel %vm801, %v825, %v827
        %v829 = vrot.slane %v342, 1
        %v830 = vsel %vm801, %v827, %v829
        %v831 = vrot.slane %v343, 1
        %v832 = vsel %vm801, %v829, %v831
        %v833 = vrot.slane %v344, 1
        %v834 = vsel %vm801, %v831, %v833
        %v835 = vrot.slane %v345, 1
        %v836 = vsel %vm801, %v833, %v835
        %v837 = vrot.slane %v346, 1
        %v838 = vsel %vm801, %v835, %v837
        %v840 = vsel %vm500, %v804, 0
        %v843 = vsel %vm500, %v806, 0
        %v846 = vsel %vm500, %v808, 0
        %v849 = vsel %vm500, %v810, 0
        %v852 = vsel %vm500, %v812, 0
        %v855 = vsel %vm500, %v814, 0
        %v858 = vsel %vm500, %v816, 0
        %v861 = vsel %vm500, %v818, 0
        %v864 = vsel %vm500, %v820, 0
        %v867 = vsel %vm500, %v822, 0
        %v870 = vsel %vm500, %v824, 0
        %v873 = vsel %vm500, %v826, 0
        %v876 = vsel %vm500, %v828, 0
        %v879 = vsel %vm500, %v830, 0
        %v882 = vsel %vm500, %v832, 0
        %v885 = vsel %vm500, %v834, 0
        %v888 = vsel %vm500, %v836, 0
        %v891 = vsel %vm500, %v838, 0
        %v894 = vsel %vm555, %v797, 0
        %896 = vmatpush.bf16.msra.mxu0 0
        %897 = vmatpush.bf16.msra.mxu0 0
        %898 = vmatpush.bf16.msra.mxu0 0
        %899 = vmatpush.bf16.msra.mxu0 0
        %900 = vmatpush.bf16.msra.mxu0 0
        %901 = vmatpush.bf16.msra.mxu0 0
        %902 = vmatpush.bf16.msra.mxu0 0
        %903 = vmatpush.bf16.msra.mxu0 %v894
        %904 = vmatmul.bf16.gmra.mxu0 %v840
        %v905 = vpop.f32.mrf.mxu0
        %v906 = vadd.f32 0.0, %v905
        %v907 = vpop.f32.mrf.mxu0
        %v908 = vadd.f32 0.0, %v907
        %909 = vmatmul.bf16.gmra.mxu0 %v843
        %v910 = vpop.f32.mrf.mxu0
        %v911 = vadd.f32 0.0, %v910
        %v912 = vpop.f32.mrf.mxu0
        %v913 = vadd.f32 0.0, %v912
        %914 = vmatmul.bf16.gmra.mxu0 %v846
        %v915 = vpop.f32.mrf.mxu0
        %v916 = vadd.f32 0.0, %v915
        %v917 = vpop.f32.mrf.mxu0
        %v918 = vadd.f32 0.0, %v917
        %919 = vmatmul.bf16.gmra.mxu0 %v849
        %v920 = vpop.f32.mrf.mxu0
        %v921 = vadd.f32 0.0, %v920
        %v922 = vpop.f32.mrf.mxu0
        %v923 = vadd.f32 0.0, %v922
        %924 = vmatmul.bf16.gmra.mxu0 %v852
        %v925 = vpop.f32.mrf.mxu0
        %v926 = vadd.f32 0.0, %v925
        %v927 = vpop.f32.mrf.mxu0
        %v928 = vadd.f32 0.0, %v927
        %929 = vmatmul.bf16.gmra.mxu0 %v855
        %v930 = vpop.f32.mrf.mxu0
        %v931 = vadd.f32 0.0, %v930
        %v932 = vpop.f32.mrf.mxu0
        %v933 = vadd.f32 0.0, %v932
        %934 = vmatmul.bf16.gmra.mxu0 %v858
        %v935 = vpop.f32.mrf.mxu0
        %v936 = vadd.f32 0.0, %v935
        %v937 = vpop.f32.mrf.mxu0
        %v938 = vadd.f32 0.0, %v937
        %939 = vmatmul.bf16.gmra.mxu0 %v861
        %v940 = vpop.f32.mrf.mxu0
        %v941 = vadd.f32 0.0, %v940
        %v942 = vpop.f32.mrf.mxu0
        %v943 = vadd.f32 0.0, %v942
        %944 = vmatmul.bf16.gmra.mxu0 %v864
        %v945 = vpop.f32.mrf.mxu0
        %v946 = vadd.f32 0.0, %v945
        %v947 = vpop.f32.mrf.mxu0
        %v948 = vadd.f32 0.0, %v947
        %949 = vmatmul.bf16.gmra.mxu0 %v867
        %v950 = vpop.f32.mrf.mxu0
        %v951 = vadd.f32 0.0, %v950
        %v952 = vpop.f32.mrf.mxu0
        %v953 = vadd.f32 0.0, %v952
        %954 = vmatmul.bf16.gmra.mxu0 %v870
        %v955 = vpop.f32.mrf.mxu0
        %v956 = vadd.f32 0.0, %v955
        %v957 = vpop.f32.mrf.mxu0
        %v958 = vadd.f32 0.0, %v957
        %959 = vmatmul.bf16.gmra.mxu0 %v873
        %v960 = vpop.f32.mrf.mxu0
        %v961 = vadd.f32 0.0, %v960
        %v962 = vpop.f32.mrf.mxu0
        %v963 = vadd.f32 0.0, %v962
        %964 = vmatmul.bf16.gmra.mxu0 %v876
        %v965 = vpop.f32.mrf.mxu0
        %v966 = vadd.f32 0.0, %v965
        %v967 = vpop.f32.mrf.mxu0
        %v968 = vadd.f32 0.0, %v967
        %969 = vmatmul.bf16.gmra.mxu0 %v879
        %v970 = vpop.f32.mrf.mxu0
        %v971 = vadd.f32 0.0, %v970
        %v972 = vpop.f32.mrf.mxu0
        %v973 = vadd.f32 0.0, %v972
        %974 = vmatmul.bf16.gmra.mxu0 %v882
        %v975 = vpop.f32.mrf.mxu0
        %v976 = vadd.f32 0.0, %v975
        %v977 = vpop.f32.mrf.mxu0
        %v978 = vadd.f32 0.0, %v977
        %979 = vmatmul.bf16.gmra.mxu0 %v885
        %v980 = vpop.f32.mrf.mxu0
        %v981 = vadd.f32 0.0, %v980
        %v982 = vpop.f32.mrf.mxu0
        %v983 = vadd.f32 0.0, %v982
        %984 = vmatmul.bf16.gmra.mxu0 %v888
        %v985 = vpop.f32.mrf.mxu0
        %v986 = vadd.f32 0.0, %v985
        %v987 = vpop.f32.mrf.mxu0
        %v988 = vadd.f32 0.0, %v987
        %989 = vmatmul.bf16.gmra.mxu0 %v891
        %v990 = vpop.f32.mrf.mxu0
        %v991 = vadd.f32 0.0, %v990
        %v992 = vpop.f32.mrf.mxu0
        %v993 = vadd.f32 0.0, %v992
        %994 = vdwg.mxu0
        %v995 = vadd.f32 %v707, %v906
        %v996 = vadd.f32 %v709, %v908
        %v997 = vadd.f32 %v712, %v911
        %v998 = vadd.f32 %v714, %v913
        %v999 = vadd.f32 %v717, %v916
        %v1000 = vadd.f32 %v719, %v918
        %v1001 = vadd.f32 %v722, %v921
        %v1002 = vadd.f32 %v724, %v923
        %v1003 = vadd.f32 %v727, %v926
        %v1004 = vadd.f32 %v729, %v928
        %v1005 = vadd.f32 %v732, %v931
        %v1006 = vadd.f32 %v734, %v933
        %v1007 = vadd.f32 %v737, %v936
        %v1008 = vadd.f32 %v739, %v938
        %v1009 = vadd.f32 %v742, %v941
        %v1010 = vadd.f32 %v744, %v943
        %v1011 = vadd.f32 %v747, %v946
        %v1012 = vadd.f32 %v749, %v948
        %v1013 = vadd.f32 %v752, %v951
        %v1014 = vadd.f32 %v754, %v953
        %v1015 = vadd.f32 %v757, %v956
        %v1016 = vadd.f32 %v759, %v958
        %v1017 = vadd.f32 %v762, %v961
        %v1018 = vadd.f32 %v764, %v963
        %v1019 = vadd.f32 %v767, %v966
        %v1020 = vadd.f32 %v769, %v968
        %v1021 = vadd.f32 %v772, %v971
        %v1022 = vadd.f32 %v774, %v973
        %v1023 = vadd.f32 %v777, %v976
        %v1024 = vadd.f32 %v779, %v978
        %v1025 = vadd.f32 %v782, %v981
        %v1026 = vadd.f32 %v784, %v983
        %v1027 = vadd.f32 %v787, %v986
        %v1028 = vadd.f32 %v789, %v988
        %v1029 = vadd.f32 %v792, %v991
        %v1030 = vadd.f32 %v794, %v993
        %v1031 = vld [vmem:[%s206 + $0x8] sm:$0xe]
        %v1032 = vld [vmem:[%s206 + $0xc] sm:$0xf]
        %v1033 = vld [vmem:[%s206 + $0x10] sm:$0xf]
        %v1034 = vld [vmem:[%s206 + $0x14] sm:$0xf]
        %v1035 = vld [vmem:[%s206 + $0x18] sm:$0xf]
        %v1036 = vld [vmem:[%s206 + $0x1c] sm:$0xf]
        %v1037 = vld [vmem:[%s206 + $0x20] sm:$0xf]
        %v1038 = vld [vmem:[%s206 + $0x24] sm:$0xf]
        %v1039 = vld [vmem:[%s206 + $0x28] sm:$0xf]
        %v1040 = vld [vmem:[%s206 + $0x2c] sm:$0xf]
        %v1041 = vld [vmem:[%s206 + $0x30] sm:$0xf]
        %v1042 = vld [vmem:[%s206 + $0x34] sm:$0xf]
        %v1043 = vld [vmem:[%s206 + $0x38] sm:$0xf]
        %v1044 = vld [vmem:[%s206 + $0x3c] sm:$0xf]
        %v1045 = vld [vmem:[%s206 + $0x40] sm:$0xf]
        %v1046 = vld [vmem:[%s206 + $0x44] sm:$0xf]
        %v1047 = vld [vmem:[%s206 + $0x48] sm:$0xf]
        %v1048 = vld [vmem:[%s206 + $0x4c] sm:$0xf]
        %v1049 = vld [vmem:[%s206 + $0x50] sm:$0xf]
        %v1050 = vld [vmem:[%s206 + $0x54] sm:$0xf]
        %v1051 = vld [vmem:[%s206 + $0x58] sm:$0xf]
        %v1052 = vld [vmem:[%s206 + $0x5c] sm:$0xf]
        %v1053 = vld [vmem:[%s206 + $0x60] sm:$0xf]
        %v1054 = vld [vmem:[%s206 + $0x64] sm:$0xf]
        %v1055 = vld [vmem:[%s206 + $0x68] sm:$0xf]
        %v1056 = vld [vmem:[%s206 + $0x6c] sm:$0xf]
        %v1057 = vld [vmem:[%s206 + $0x70] sm:$0xf]
        %v1058 = vld [vmem:[%s206 + $0x74] sm:$0xf]
        %v1059 = vld [vmem:[%s206 + $0x78] sm:$0xf]
        %v1060 = vld [vmem:[%s206 + $0x7c] sm:$0xf]
        %v1061 = vld [vmem:[%s206 + $0x80] sm:$0xf]
        %v1062 = vld [vmem:[%s206 + $0x84] sm:$0xf]
        %v1063 = vld [vmem:[%s206 + $0x88] sm:$0xf]
        %v1064 = vld [vmem:[%s206 + $0x8c] sm:$0xf]
        %v1065 = vld [vmem:[%s206 + $0x90] sm:$0xf]
        %v1066 = vld [vmem:[%s206 + $0x94] sm:$0xf]
        %v1067 = vld [vmem:[%s206 + $0x98] sm:$0x1]
        %v1068 = vld [vmem:[%s210 + $0x4] sm:$0xc]
        %v1106 = vunpack.c.l.b16 %v1031
        %v1107 = vunpack.c.l.b16 %v1032
        %v1108 = vunpack.c.l.b16 %v1033
        %v1109 = vunpack.c.l.b16 %v1034
        %v1110 = vunpack.c.l.b16 %v1035
        %v1111 = vunpack.c.l.b16 %v1036
        %v1112 = vunpack.c.l.b16 %v1037
        %v1113 = vunpack.c.l.b16 %v1038
        %v1114 = vunpack.c.l.b16 %v1039
        %v1115 = vunpack.c.l.b16 %v1040
        %v1116 = vunpack.c.l.b16 %v1041
        %v1117 = vunpack.c.l.b16 %v1042
        %v1118 = vunpack.c.l.b16 %v1043
        %v1119 = vunpack.c.l.b16 %v1044
        %v1120 = vunpack.c.l.b16 %v1045
        %v1121 = vunpack.c.l.b16 %v1046
        %v1122 = vunpack.c.l.b16 %v1047
        %v1123 = vunpack.c.l.b16 %v1048
        %v1124 = vunpack.c.l.b16 %v1049
        %v1125 = vunpack.c.l.b16 %v1050
        %v1126 = vunpack.c.l.b16 %v1051
        %v1127 = vunpack.c.l.b16 %v1052
        %v1128 = vunpack.c.l.b16 %v1053
        %v1129 = vunpack.c.l.b16 %v1054
        %v1130 = vunpack.c.l.b16 %v1055
        %v1131 = vunpack.c.l.b16 %v1056
        %v1132 = vunpack.c.l.b16 %v1057
        %v1133 = vunpack.c.l.b16 %v1058
        %v1134 = vunpack.c.l.b16 %v1059
        %v1135 = vunpack.c.l.b16 %v1060
        %v1136 = vunpack.c.l.b16 %v1061
        %v1137 = vunpack.c.l.b16 %v1062
        %v1138 = vunpack.c.l.b16 %v1063
        %v1139 = vunpack.c.l.b16 %v1064
        %v1140 = vunpack.c.l.b16 %v1065
        %v1141 = vunpack.c.l.b16 %v1066
        %v1142 = vunpack.c.l.b16 %v1067
        %v1143 = vpack.c.b16 %v1107, %v1106
        %v1144 = vpack.c.b16 %v1109, %v1108
        %v1145 = vpack.c.b16 %v1111, %v1110
        %v1146 = vpack.c.b16 %v1113, %v1112
        %v1147 = vpack.c.b16 %v1115, %v1114
        %v1148 = vpack.c.b16 %v1117, %v1116
        %v1149 = vpack.c.b16 %v1119, %v1118
        %v1150 = vpack.c.b16 %v1121, %v1120
        %v1151 = vpack.c.b16 %v1123, %v1122
        %v1152 = vpack.c.b16 %v1125, %v1124
        %v1153 = vpack.c.b16 %v1127, %v1126
        %v1154 = vpack.c.b16 %v1129, %v1128
        %v1155 = vpack.c.b16 %v1131, %v1130
        %v1156 = vpack.c.b16 %v1133, %v1132
        %v1157 = vpack.c.b16 %v1135, %v1134
        %v1158 = vpack.c.b16 %v1137, %v1136
        %v1159 = vpack.c.b16 %v1139, %v1138
        %v1160 = vpack.c.b16 %v1141, %v1140
        %v1161 = vpack.c.b16 %v1142, %v1142
        %v1162 = vrot.slane %v1143, 1
        %v1163 = vrot.slane %v1144, 1
        %v1164 = vsel %vm801, %v1162, %v1163
        %v1165 = vrot.slane %v1145, 1
        %v1166 = vsel %vm801, %v1163, %v1165
        %v1167 = vrot.slane %v1146, 1
        %v1168 = vsel %vm801, %v1165, %v1167
        %v1169 = vrot.slane %v1147, 1
        %v1170 = vsel %vm801, %v1167, %v1169
        %v1171 = vrot.slane %v1148, 1
        %v1172 = vsel %vm801, %v1169, %v1171
        %v1173 = vrot.slane %v1149, 1
        %v1174 = vsel %vm801, %v1171, %v1173
        %v1175 = vrot.slane %v1150, 1
        %v1176 = vsel %vm801, %v1173, %v1175
        %v1177 = vrot.slane %v1151, 1
        %v1178 = vsel %vm801, %v1175, %v1177
        %v1179 = vrot.slane %v1152, 1
        %v1180 = vsel %vm801, %v1177, %v1179
        %v1181 = vrot.slane %v1153, 1
        %v1182 = vsel %vm801, %v1179, %v1181
        %v1183 = vrot.slane %v1154, 1
        %v1184 = vsel %vm801, %v1181, %v1183
        %v1185 = vrot.slane %v1155, 1
        %v1186 = vsel %vm801, %v1183, %v1185
        %v1187 = vrot.slane %v1156, 1
        %v1188 = vsel %vm801, %v1185, %v1187
        %v1189 = vrot.slane %v1157, 1
        %v1190 = vsel %vm801, %v1187, %v1189
        %v1191 = vrot.slane %v1158, 1
        %v1192 = vsel %vm801, %v1189, %v1191
        %v1193 = vrot.slane %v1159, 1
        %v1194 = vsel %vm801, %v1191, %v1193
        %v1195 = vrot.slane %v1160, 1
        %v1196 = vsel %vm801, %v1193, %v1195
        %v1197 = vrot.slane %v1161, 1
        %v1198 = vsel %vm801, %v1195, %v1197
        %v1200 = vunpack.c.l.b16 %v1068
        %v1201 = vpack.c.b16 %v1200, %v1200
        %v1202 = vrot.slane %v1201, 2
        %v1204 = vsel %vm500, %v1164, 0
        %v1207 = vsel %vm500, %v1166, 0
        %v1210 = vsel %vm500, %v1168, 0
        %v1213 = vsel %vm500, %v1170, 0
        %v1216 = vsel %vm500, %v1172, 0
        %v1219 = vsel %vm500, %v1174, 0
        %v1222 = vsel %vm500, %v1176, 0
        %v1225 = vsel %vm500, %v1178, 0
        %v1228 = vsel %vm500, %v1180, 0
        %v1231 = vsel %vm500, %v1182, 0
        %v1234 = vsel %vm500, %v1184, 0
        %v1237 = vsel %vm500, %v1186, 0
        %v1240 = vsel %vm500, %v1188, 0
        %v1243 = vsel %vm500, %v1190, 0
        %v1246 = vsel %vm500, %v1192, 0
        %v1249 = vsel %vm500, %v1194, 0
        %v1252 = vsel %vm500, %v1196, 0
        %v1255 = vsel %vm500, %v1198, 0
        %v1258 = vsel %vm555, %v1202, 0
        %1260 = vmatpush.bf16.msra.mxu0 0
        %1261 = vmatpush.bf16.msra.mxu0 0
        %1262 = vmatpush.bf16.msra.mxu0 0
        %1263 = vmatpush.bf16.msra.mxu0 0
        %1264 = vmatpush.bf16.msra.mxu0 0
        %1265 = vmatpush.bf16.msra.mxu0 0
        %1266 = vmatpush.bf16.msra.mxu0 0
        %1267 = vmatpush.bf16.msra.mxu0 %v1258
        %1268 = vmatmul.bf16.gmra.mxu0 %v1204
        %v1269 = vpop.f32.mrf.mxu0
        %v1270 = vadd.f32 0.0, %v1269
        %v1271 = vpop.f32.mrf.mxu0
        %v1272 = vadd.f32 0.0, %v1271
        %1273 = vmatmul.bf16.gmra.mxu0 %v1207
        %v1274 = vpop.f32.mrf.mxu0
        %v1275 = vadd.f32 0.0, %v1274
        %v1276 = vpop.f32.mrf.mxu0
        %v1277 = vadd.f32 0.0, %v1276
        %1278 = vmatmul.bf16.gmra.mxu0 %v1210
        %v1279 = vpop.f32.mrf.mxu0
        %v1280 = vadd.f32 0.0, %v1279
        %v1281 = vpop.f32.mrf.mxu0
        %v1282 = vadd.f32 0.0, %v1281
        %1283 = vmatmul.bf16.gmra.mxu0 %v1213
        %v1284 = vpop.f32.mrf.mxu0
        %v1285 = vadd.f32 0.0, %v1284
        %v1286 = vpop.f32.mrf.mxu0
        %v1287 = vadd.f32 0.0, %v1286
        %1288 = vmatmul.bf16.gmra.mxu0 %v1216
        %v1289 = vpop.f32.mrf.mxu0
        %v1290 = vadd.f32 0.0, %v1289
        %v1291 = vpop.f32.mrf.mxu0
        %v1292 = vadd.f32 0.0, %v1291
        %1293 = vmatmul.bf16.gmra.mxu0 %v1219
        %v1294 = vpop.f32.mrf.mxu0
        %v1295 = vadd.f32 0.0, %v1294
        %v1296 = vpop.f32.mrf.mxu0
        %v1297 = vadd.f32 0.0, %v1296
        %1298 = vmatmul.bf16.gmra.mxu0 %v1222
        %v1299 = vpop.f32.mrf.mxu0
        %v1300 = vadd.f32 0.0, %v1299
        %v1301 = vpop.f32.mrf.mxu0
        %v1302 = vadd.f32 0.0, %v1301
        %1303 = vmatmul.bf16.gmra.mxu0 %v1225
        %v1304 = vpop.f32.mrf.mxu0
        %v1305 = vadd.f32 0.0, %v1304
        %v1306 = vpop.f32.mrf.mxu0
        %v1307 = vadd.f32 0.0, %v1306
        %1308 = vmatmul.bf16.gmra.mxu0 %v1228
        %v1309 = vpop.f32.mrf.mxu0
        %v1310 = vadd.f32 0.0, %v1309
        %v1311 = vpop.f32.mrf.mxu0
        %v1312 = vadd.f32 0.0, %v1311
        %1313 = vmatmul.bf16.gmra.mxu0 %v1231
        %v1314 = vpop.f32.mrf.mxu0
        %v1315 = vadd.f32 0.0, %v1314
        %v1316 = vpop.f32.mrf.mxu0
        %v1317 = vadd.f32 0.0, %v1316
        %1318 = vmatmul.bf16.gmra.mxu0 %v1234
        %v1319 = vpop.f32.mrf.mxu0
        %v1320 = vadd.f32 0.0, %v1319
        %v1321 = vpop.f32.mrf.mxu0
        %v1322 = vadd.f32 0.0, %v1321
        %1323 = vmatmul.bf16.gmra.mxu0 %v1237
        %v1324 = vpop.f32.mrf.mxu0
        %v1325 = vadd.f32 0.0, %v1324
        %v1326 = vpop.f32.mrf.mxu0
        %v1327 = vadd.f32 0.0, %v1326
        %1328 = vmatmul.bf16.gmra.mxu0 %v1240
        %v1329 = vpop.f32.mrf.mxu0
        %v1330 = vadd.f32 0.0, %v1329
        %v1331 = vpop.f32.mrf.mxu0
        %v1332 = vadd.f32 0.0, %v1331
        %1333 = vmatmul.bf16.gmra.mxu0 %v1243
        %v1334 = vpop.f32.mrf.mxu0
        %v1335 = vadd.f32 0.0, %v1334
        %v1336 = vpop.f32.mrf.mxu0
        %v1337 = vadd.f32 0.0, %v1336
        %1338 = vmatmul.bf16.gmra.mxu0 %v1246
        %v1339 = vpop.f32.mrf.mxu0
        %v1340 = vadd.f32 0.0, %v1339
        %v1341 = vpop.f32.mrf.mxu0
        %v1342 = vadd.f32 0.0, %v1341
        %1343 = vmatmul.bf16.gmra.mxu0 %v1249
        %v1344 = vpop.f32.mrf.mxu0
        %v1345 = vadd.f32 0.0, %v1344
        %v1346 = vpop.f32.mrf.mxu0
        %v1347 = vadd.f32 0.0, %v1346
        %1348 = vmatmul.bf16.gmra.mxu0 %v1252
        %v1349 = vpop.f32.mrf.mxu0
        %v1350 = vadd.f32 0.0, %v1349
        %v1351 = vpop.f32.mrf.mxu0
        %v1352 = vadd.f32 0.0, %v1351
        %1353 = vmatmul.bf16.gmra.mxu0 %v1255
        %v1354 = vpop.f32.mrf.mxu0
        %v1355 = vadd.f32 0.0, %v1354
        %v1356 = vpop.f32.mrf.mxu0
        %v1357 = vadd.f32 0.0, %v1356
        %1358 = vdwg.mxu0
        %v1359 = vadd.f32 %v995, %v1270
        %v1360 = vadd.f32 %v996, %v1272
        %v1361 = vadd.f32 %v997, %v1275
        %v1362 = vadd.f32 %v998, %v1277
        %v1363 = vadd.f32 %v999, %v1280
        %v1364 = vadd.f32 %v1000, %v1282
        %v1365 = vadd.f32 %v1001, %v1285
        %v1366 = vadd.f32 %v1002, %v1287
        %v1367 = vadd.f32 %v1003, %v1290
        %v1368 = vadd.f32 %v1004, %v1292
        %v1369 = vadd.f32 %v1005, %v1295
        %v1370 = vadd.f32 %v1006, %v1297
        %v1371 = vadd.f32 %v1007, %v1300
        %v1372 = vadd.f32 %v1008, %v1302
        %v1373 = vadd.f32 %v1009, %v1305
        %v1374 = vadd.f32 %v1010, %v1307
        %v1375 = vadd.f32 %v1011, %v1310
        %v1376 = vadd.f32 %v1012, %v1312
        %v1377 = vadd.f32 %v1013, %v1315
        %v1378 = vadd.f32 %v1014, %v1317
        %v1379 = vadd.f32 %v1015, %v1320
        %v1380 = vadd.f32 %v1016, %v1322
        %v1381 = vadd.f32 %v1017, %v1325
        %v1382 = vadd.f32 %v1018, %v1327
        %v1383 = vadd.f32 %v1019, %v1330
        %v1384 = vadd.f32 %v1020, %v1332
        %v1385 = vadd.f32 %v1021, %v1335
        %v1386 = vadd.f32 %v1022, %v1337
        %v1387 = vadd.f32 %v1023, %v1340
        %v1388 = vadd.f32 %v1024, %v1342
        %v1389 = vadd.f32 %v1025, %v1345
        %v1390 = vadd.f32 %v1026, %v1347
        %v1391 = vadd.f32 %v1027, %v1350
        %v1392 = vadd.f32 %v1028, %v1352
        %v1393 = vadd.f32 %v1029, %v1355
        %v1394 = vadd.f32 %v1030, %v1357
        %v1395 = vld [vmem:[%s206 + $0x98] sm:$0x3]
        %v1396 = vld [vmem:[%s210 + $0x8] sm:$0x3]
        %v1398 = vunpack.c.l.b16 %v1395
        %v1399 = vpack.c.b16 %v1398, %v1398
        %vm1400 = vsmask.f32 6400
        %v1402 = vshrl.u32 %v1143, 16
        %v1404 = vrot.slane %v1402, 1
        %v1405 = vshll.u32 %v1143, 16
        %v1407 = vrot.slane %v1405, 2
        %v1408 = vor.u32 %v1404, %v1407
        %v1410 = vshrl.u32 %v1144, 16
        %v1412 = vrot.slane %v1410, 1
        %v1413 = vshll.u32 %v1144, 16
        %v1415 = vrot.slane %v1413, 2
        %v1416 = vor.u32 %v1412, %v1415
        %v1417 = vsel %vm1400, %v1408, %v1416
        %v1419 = vshrl.u32 %v1145, 16
        %v1421 = vrot.slane %v1419, 1
        %v1422 = vshll.u32 %v1145, 16
        %v1424 = vrot.slane %v1422, 2
        %v1425 = vor.u32 %v1421, %v1424
        %v1426 = vsel %vm1400, %v1416, %v1425
        %v1428 = vshrl.u32 %v1146, 16
        %v1430 = vrot.slane %v1428, 1
        %v1431 = vshll.u32 %v1146, 16
        %v1433 = vrot.slane %v1431, 2
        %v1434 = vor.u32 %v1430, %v1433
        %v1435 = vsel %vm1400, %v1425, %v1434
        %v1437 = vshrl.u32 %v1147, 16
        %v1439 = vrot.slane %v1437, 1
        %v1440 = vshll.u32 %v1147, 16
        %v1442 = vrot.slane %v1440, 2
        %v1443 = vor.u32 %v1439, %v1442
        %v1444 = vsel %vm1400, %v1434, %v1443
        %v1446 = vshrl.u32 %v1148, 16
        %v1448 = vrot.slane %v1446, 1
        %v1449 = vshll.u32 %v1148, 16
        %v1451 = vrot.slane %v1449, 2
        %v1452 = vor.u32 %v1448, %v1451
        %v1453 = vsel %vm1400, %v1443, %v1452
        %v1455 = vshrl.u32 %v1149, 16
        %v1457 = vrot.slane %v1455, 1
        %v1458 = vshll.u32 %v1149, 16
        %v1460 = vrot.slane %v1458, 2
        %v1461 = vor.u32 %v1457, %v1460
        %v1462 = vsel %vm1400, %v1452, %v1461
        %v1464 = vshrl.u32 %v1150, 16
        %v1466 = vrot.slane %v1464, 1
        %v1467 = vshll.u32 %v1150, 16
        %v1469 = vrot.slane %v1467, 2
        %v1470 = vor.u32 %v1466, %v1469
        %v1471 = vsel %vm1400, %v1461, %v1470
        %v1473 = vshrl.u32 %v1151, 16
        %v1475 = vrot.slane %v1473, 1
        %v1476 = vshll.u32 %v1151, 16
        %v1478 = vrot.slane %v1476, 2
        %v1479 = vor.u32 %v1475, %v1478
        %v1480 = vsel %vm1400, %v1470, %v1479
        %v1482 = vshrl.u32 %v1152, 16
        %v1484 = vrot.slane %v1482, 1
        %v1485 = vshll.u32 %v1152, 16
        %v1487 = vrot.slane %v1485, 2
        %v1488 = vor.u32 %v1484, %v1487
        %v1489 = vsel %vm1400, %v1479, %v1488
        %v1491 = vshrl.u32 %v1153, 16
        %v1493 = vrot.slane %v1491, 1
        %v1494 = vshll.u32 %v1153, 16
        %v1496 = vrot.slane %v1494, 2
        %v1497 = vor.u32 %v1493, %v1496
        %v1498 = vsel %vm1400, %v1488, %v1497
        %v1500 = vshrl.u32 %v1154, 16
        %v1502 = vrot.slane %v1500, 1
        %v1503 = vshll.u32 %v1154, 16
        %v1505 = vrot.slane %v1503, 2
        %v1506 = vor.u32 %v1502, %v1505
        %v1507 = vsel %vm1400, %v1497, %v1506
        %v1509 = vshrl.u32 %v1155, 16
        %v1511 = vrot.slane %v1509, 1
        %v1512 = vshll.u32 %v1155, 16
        %v1514 = vrot.slane %v1512, 2
        %v1515 = vor.u32 %v1511, %v1514
        %v1516 = vsel %vm1400, %v1506, %v1515
        %v1518 = vshrl.u32 %v1156, 16
        %v1520 = vrot.slane %v1518, 1
        %v1521 = vshll.u32 %v1156, 16
        %v1523 = vrot.slane %v1521, 2
        %v1524 = vor.u32 %v1520, %v1523
        %v1525 = vsel %vm1400, %v1515, %v1524
        %v1527 = vshrl.u32 %v1157, 16
        %v1529 = vrot.slane %v1527, 1
        %v1530 = vshll.u32 %v1157, 16
        %v1532 = vrot.slane %v1530, 2
        %v1533 = vor.u32 %v1529, %v1532
        %v1534 = vsel %vm1400, %v1524, %v1533
        %v1536 = vshrl.u32 %v1158, 16
        %v1538 = vrot.slane %v1536, 1
        %v1539 = vshll.u32 %v1158, 16
        %v1541 = vrot.slane %v1539, 2
        %v1542 = vor.u32 %v1538, %v1541
        %v1543 = vsel %vm1400, %v1533, %v1542
        %v1545 = vshrl.u32 %v1159, 16
        %v1547 = vrot.slane %v1545, 1
        %v1548 = vshll.u32 %v1159, 16
        %v1550 = vrot.slane %v1548, 2
        %v1551 = vor.u32 %v1547, %v1550
        %v1552 = vsel %vm1400, %v1542, %v1551
        %v1554 = vshrl.u32 %v1160, 16
        %v1556 = vrot.slane %v1554, 1
        %v1557 = vshll.u32 %v1160, 16
        %v1559 = vrot.slane %v1557, 2
        %v1560 = vor.u32 %v1556, %v1559
        %v1561 = vsel %vm1400, %v1551, %v1560
        %v1563 = vshrl.u32 %v1399, 16
        %v1565 = vrot.slane %v1563, 1
        %v1566 = vshll.u32 %v1399, 16
        %v1568 = vrot.slane %v1566, 2
        %v1569 = vor.u32 %v1565, %v1568
        %v1570 = vsel %vm1400, %v1560, %v1569
        %v1572 = vsel %vm500, %v1417, 0
        %v1575 = vsel %vm500, %v1426, 0
        %v1578 = vsel %vm500, %v1435, 0
        %v1581 = vsel %vm500, %v1444, 0
        %v1584 = vsel %vm500, %v1453, 0
        %v1587 = vsel %vm500, %v1462, 0
        %v1590 = vsel %vm500, %v1471, 0
        %v1593 = vsel %vm500, %v1480, 0
        %v1596 = vsel %vm500, %v1489, 0
        %v1599 = vsel %vm500, %v1498, 0
        %v1602 = vsel %vm500, %v1507, 0
        %v1605 = vsel %vm500, %v1516, 0
        %v1608 = vsel %vm500, %v1525, 0
        %v1611 = vsel %vm500, %v1534, 0
        %v1614 = vsel %vm500, %v1543, 0
        %v1617 = vsel %vm500, %v1552, 0
        %v1620 = vsel %vm500, %v1561, 0
        %v1623 = vsel %vm500, %v1570, 0
        %v1626 = vsel %vm555, %v1396, 0
        %1628 = vmatpush.bf16.msra.mxu0 0
        %1629 = vmatpush.bf16.msra.mxu0 0
        %1630 = vmatpush.bf16.msra.mxu0 0
        %1631 = vmatpush.bf16.msra.mxu0 0
        %1632 = vmatpush.bf16.msra.mxu0 0
        %1633 = vmatpush.bf16.msra.mxu0 0
        %1634 = vmatpush.bf16.msra.mxu0 0
        %1635 = vmatpush.bf16.msra.mxu0 %v1626
        %1636 = vmatmul.bf16.gmra.mxu0 %v1572
        %v1637 = vpop.f32.mrf.mxu0
        %v1638 = vadd.f32 0.0, %v1637
        %v1639 = vpop.f32.mrf.mxu0
        %v1640 = vadd.f32 0.0, %v1639
        %1641 = vmatmul.bf16.gmra.mxu0 %v1575
        %v1642 = vpop.f32.mrf.mxu0
        %v1643 = vadd.f32 0.0, %v1642
        %v1644 = vpop.f32.mrf.mxu0
        %v1645 = vadd.f32 0.0, %v1644
        %1646 = vmatmul.bf16.gmra.mxu0 %v1578
        %v1647 = vpop.f32.mrf.mxu0
        %v1648 = vadd.f32 0.0, %v1647
        %v1649 = vpop.f32.mrf.mxu0
        %v1650 = vadd.f32 0.0, %v1649
        %1651 = vmatmul.bf16.gmra.mxu0 %v1581
        %v1652 = vpop.f32.mrf.mxu0
        %v1653 = vadd.f32 0.0, %v1652
        %v1654 = vpop.f32.mrf.mxu0
        %v1655 = vadd.f32 0.0, %v1654
        %1656 = vmatmul.bf16.gmra.mxu0 %v1584
        %v1657 = vpop.f32.mrf.mxu0
        %v1658 = vadd.f32 0.0, %v1657
        %v1659 = vpop.f32.mrf.mxu0
        %v1660 = vadd.f32 0.0, %v1659
        %1661 = vmatmul.bf16.gmra.mxu0 %v1587
        %v1662 = vpop.f32.mrf.mxu0
        %v1663 = vadd.f32 0.0, %v1662
        %v1664 = vpop.f32.mrf.mxu0
        %v1665 = vadd.f32 0.0, %v1664
        %1666 = vmatmul.bf16.gmra.mxu0 %v1590
        %v1667 = vpop.f32.mrf.mxu0
        %v1668 = vadd.f32 0.0, %v1667
        %v1669 = vpop.f32.mrf.mxu0
        %v1670 = vadd.f32 0.0, %v1669
        %1671 = vmatmul.bf16.gmra.mxu0 %v1593
        %v1672 = vpop.f32.mrf.mxu0
        %v1673 = vadd.f32 0.0, %v1672
        %v1674 = vpop.f32.mrf.mxu0
        %v1675 = vadd.f32 0.0, %v1674
        %1676 = vmatmul.bf16.gmra.mxu0 %v1596
        %v1677 = vpop.f32.mrf.mxu0
        %v1678 = vadd.f32 0.0, %v1677
        %v1679 = vpop.f32.mrf.mxu0
        %v1680 = vadd.f32 0.0, %v1679
        %1681 = vmatmul.bf16.gmra.mxu0 %v1599
        %v1682 = vpop.f32.mrf.mxu0
        %v1683 = vadd.f32 0.0, %v1682
        %v1684 = vpop.f32.mrf.mxu0
        %v1685 = vadd.f32 0.0, %v1684
        %1686 = vmatmul.bf16.gmra.mxu0 %v1602
        %v1687 = vpop.f32.mrf.mxu0
        %v1688 = vadd.f32 0.0, %v1687
        %v1689 = vpop.f32.mrf.mxu0
        %v1690 = vadd.f32 0.0, %v1689
        %1691 = vmatmul.bf16.gmra.mxu0 %v1605
        %v1692 = vpop.f32.mrf.mxu0
        %v1693 = vadd.f32 0.0, %v1692
        %v1694 = vpop.f32.mrf.mxu0
        %v1695 = vadd.f32 0.0, %v1694
        %1696 = vmatmul.bf16.gmra.mxu0 %v1608
        %v1697 = vpop.f32.mrf.mxu0
        %v1698 = vadd.f32 0.0, %v1697
        %v1699 = vpop.f32.mrf.mxu0
        %v1700 = vadd.f32 0.0, %v1699
        %1701 = vmatmul.bf16.gmra.mxu0 %v1611
        %v1702 = vpop.f32.mrf.mxu0
        %v1703 = vadd.f32 0.0, %v1702
        %v1704 = vpop.f32.mrf.mxu0
        %v1705 = vadd.f32 0.0, %v1704
        %1706 = vmatmul.bf16.gmra.mxu0 %v1614
        %v1707 = vpop.f32.mrf.mxu0
        %v1708 = vadd.f32 0.0, %v1707
        %v1709 = vpop.f32.mrf.mxu0
        %v1710 = vadd.f32 0.0, %v1709
        %1711 = vmatmul.bf16.gmra.mxu0 %v1617
        %v1712 = vpop.f32.mrf.mxu0
        %v1713 = vadd.f32 0.0, %v1712
        %v1714 = vpop.f32.mrf.mxu0
        %v1715 = vadd.f32 0.0, %v1714
        %1716 = vmatmul.bf16.gmra.mxu0 %v1620
        %v1717 = vpop.f32.mrf.mxu0
        %v1718 = vadd.f32 0.0, %v1717
        %v1719 = vpop.f32.mrf.mxu0
        %v1720 = vadd.f32 0.0, %v1719
        %1721 = vmatmul.bf16.gmra.mxu0 %v1623
        %v1722 = vpop.f32.mrf.mxu0
        %v1723 = vadd.f32 0.0, %v1722
        %v1724 = vpop.f32.mrf.mxu0
        %v1725 = vadd.f32 0.0, %v1724
        %1726 = vdwg.mxu0
        %v1727 = vadd.f32 %v1359, %v1638
        %v1728 = vadd.f32 %v1360, %v1640
        %v1729 = vadd.f32 %v1361, %v1643
        %v1730 = vadd.f32 %v1362, %v1645
        %v1731 = vadd.f32 %v1363, %v1648
        %v1732 = vadd.f32 %v1364, %v1650
        %v1733 = vadd.f32 %v1365, %v1653
        %v1734 = vadd.f32 %v1366, %v1655
        %v1735 = vadd.f32 %v1367, %v1658
        %v1736 = vadd.f32 %v1368, %v1660
        %v1737 = vadd.f32 %v1369, %v1663
        %v1738 = vadd.f32 %v1370, %v1665
        %v1739 = vadd.f32 %v1371, %v1668
        %v1740 = vadd.f32 %v1372, %v1670
        %v1741 = vadd.f32 %v1373, %v1673
        %v1742 = vadd.f32 %v1374, %v1675
        %v1743 = vadd.f32 %v1375, %v1678
        %v1744 = vadd.f32 %v1376, %v1680
        %v1745 = vadd.f32 %v1377, %v1683
        %v1746 = vadd.f32 %v1378, %v1685
        %v1747 = vadd.f32 %v1379, %v1688
        %v1748 = vadd.f32 %v1380, %v1690
        %v1749 = vadd.f32 %v1381, %v1693
        %v1750 = vadd.f32 %v1382, %v1695
        %v1751 = vadd.f32 %v1383, %v1698
        %v1752 = vadd.f32 %v1384, %v1700
        %v1753 = vadd.f32 %v1385, %v1703
        %v1754 = vadd.f32 %v1386, %v1705
        %v1755 = vadd.f32 %v1387, %v1708
        %v1756 = vadd.f32 %v1388, %v1710
        %v1757 = vadd.f32 %v1389, %v1713
        %v1758 = vadd.f32 %v1390, %v1715
        %v1759 = vadd.f32 %v1391, %v1718
        %v1760 = vadd.f32 %v1392, %v1720
        %v1761 = vadd.f32 %v1393, %v1723
        %v1762 = vadd.f32 %v1394, %v1725
        %v1763 = vld [vmem:[%s206 + $0x8] sm:$0xc]
        %v1764 = vld [vmem:[%s210 + $0x8] sm:$0xc]
        %v1766 = vunpack.c.l.b16 %v1763
        %v1767 = vpack.c.b16 %v1107, %v1766
        %vm1768 = vcmask 1045504
        %v1769 = vrot.slane %v1767, 2
        %v1770 = vrot.slane %v1144, 2
        %v1771 = vsel %vm1768, %v1769, %v1770
        %v1772 = vrot.slane %v1145, 2
        %v1773 = vsel %vm1768, %v1770, %v1772
        %v1774 = vrot.slane %v1146, 2
        %v1775 = vsel %vm1768, %v1772, %v1774
        %v1776 = vrot.slane %v1147, 2
        %v1777 = vsel %vm1768, %v1774, %v1776
        %v1778 = vrot.slane %v1148, 2
        %v1779 = vsel %vm1768, %v1776, %v1778
        %v1780 = vrot.slane %v1149, 2
        %v1781 = vsel %vm1768, %v1778, %v1780
        %v1782 = vrot.slane %v1150, 2
        %v1783 = vsel %vm1768, %v1780, %v1782
        %v1784 = vrot.slane %v1151, 2
        %v1785 = vsel %vm1768, %v1782, %v1784
        %v1786 = vrot.slane %v1152, 2
        %v1787 = vsel %vm1768, %v1784, %v1786
        %v1788 = vrot.slane %v1153, 2
        %v1789 = vsel %vm1768, %v1786, %v1788
        %v1790 = vrot.slane %v1154, 2
        %v1791 = vsel %vm1768, %v1788, %v1790
        %v1792 = vrot.slane %v1155, 2
        %v1793 = vsel %vm1768, %v1790, %v1792
        %v1794 = vrot.slane %v1156, 2
        %v1795 = vsel %vm1768, %v1792, %v1794
        %v1796 = vrot.slane %v1157, 2
        %v1797 = vsel %vm1768, %v1794, %v1796
        %v1798 = vrot.slane %v1158, 2
        %v1799 = vsel %vm1768, %v1796, %v1798
        %v1800 = vrot.slane %v1159, 2
        %v1801 = vsel %vm1768, %v1798, %v1800
        %v1802 = vrot.slane %v1160, 2
        %v1803 = vsel %vm1768, %v1800, %v1802
        %v1804 = vrot.slane %v1399, 2
        %v1805 = vsel %vm1768, %v1802, %v1804
        %v1807 = vunpack.c.l.b16 %v1764
        %v1808 = vpack.c.b16 %v1807, %v1807
        %v1809 = vrot.slane %v1808, 2
        %v1811 = vsel %vm500, %v1771, 0
        %v1814 = vsel %vm500, %v1773, 0
        %v1817 = vsel %vm500, %v1775, 0
        %v1820 = vsel %vm500, %v1777, 0
        %v1823 = vsel %vm500, %v1779, 0
        %v1826 = vsel %vm500, %v1781, 0
        %v1829 = vsel %vm500, %v1783, 0
        %v1832 = vsel %vm500, %v1785, 0
        %v1835 = vsel %vm500, %v1787, 0
        %v1838 = vsel %vm500, %v1789, 0
        %v1841 = vsel %vm500, %v1791, 0
        %v1844 = vsel %vm500, %v1793, 0
        %v1847 = vsel %vm500, %v1795, 0
        %v1850 = vsel %vm500, %v1797, 0
        %v1853 = vsel %vm500, %v1799, 0
        %v1856 = vsel %vm500, %v1801, 0
        %v1859 = vsel %vm500, %v1803, 0
        %v1862 = vsel %vm500, %v1805, 0
        %v1865 = vsel %vm555, %v1809, 0
        %1867 = vmatpush.bf16.msra.mxu0 0
        %1868 = vmatpush.bf16.msra.mxu0 0
        %1869 = vmatpush.bf16.msra.mxu0 0
        %1870 = vmatpush.bf16.msra.mxu0 0
        %1871 = vmatpush.bf16.msra.mxu0 0
        %1872 = vmatpush.bf16.msra.mxu0 0
        %1873 = vmatpush.bf16.msra.mxu0 0
        %1874 = vmatpush.bf16.msra.mxu0 %v1865
        %1875 = vmatmul.bf16.gmra.mxu0 %v1811
        %v1876 = vpop.f32.mrf.mxu0
        %v1877 = vadd.f32 0.0, %v1876
        %v1878 = vpop.f32.mrf.mxu0
        %v1879 = vadd.f32 0.0, %v1878
        %1880 = vmatmul.bf16.gmra.mxu0 %v1814
        %v1881 = vpop.f32.mrf.mxu0
        %v1882 = vadd.f32 0.0, %v1881
        %v1883 = vpop.f32.mrf.mxu0
        %v1884 = vadd.f32 0.0, %v1883
        %1885 = vmatmul.bf16.gmra.mxu0 %v1817
        %v1886 = vpop.f32.mrf.mxu0
        %v1887 = vadd.f32 0.0, %v1886
        %v1888 = vpop.f32.mrf.mxu0
        %v1889 = vadd.f32 0.0, %v1888
        %1890 = vmatmul.bf16.gmra.mxu0 %v1820
        %v1891 = vpop.f32.mrf.mxu0
        %v1892 = vadd.f32 0.0, %v1891
        %v1893 = vpop.f32.mrf.mxu0
        %v1894 = vadd.f32 0.0, %v1893
        %1895 = vmatmul.bf16.gmra.mxu0 %v1823
        %v1896 = vpop.f32.mrf.mxu0
        %v1897 = vadd.f32 0.0, %v1896
        %v1898 = vpop.f32.mrf.mxu0
        %v1899 = vadd.f32 0.0, %v1898
        %1900 = vmatmul.bf16.gmra.mxu0 %v1826
        %v1901 = vpop.f32.mrf.mxu0
        %v1902 = vadd.f32 0.0, %v1901
        %v1903 = vpop.f32.mrf.mxu0
        %v1904 = vadd.f32 0.0, %v1903
        %1905 = vmatmul.bf16.gmra.mxu0 %v1829
        %v1906 = vpop.f32.mrf.mxu0
        %v1907 = vadd.f32 0.0, %v1906
        %v1908 = vpop.f32.mrf.mxu0
        %v1909 = vadd.f32 0.0, %v1908
        %1910 = vmatmul.bf16.gmra.mxu0 %v1832
        %v1911 = vpop.f32.mrf.mxu0
        %v1912 = vadd.f32 0.0, %v1911
        %v1913 = vpop.f32.mrf.mxu0
        %v1914 = vadd.f32 0.0, %v1913
        %1915 = vmatmul.bf16.gmra.mxu0 %v1835
        %v1916 = vpop.f32.mrf.mxu0
        %v1917 = vadd.f32 0.0, %v1916
        %v1918 = vpop.f32.mrf.mxu0
        %v1919 = vadd.f32 0.0, %v1918
        %1920 = vmatmul.bf16.gmra.mxu0 %v1838
        %v1921 = vpop.f32.mrf.mxu0
        %v1922 = vadd.f32 0.0, %v1921
        %v1923 = vpop.f32.mrf.mxu0
        %v1924 = vadd.f32 0.0, %v1923
        %1925 = vmatmul.bf16.gmra.mxu0 %v1841
        %v1926 = vpop.f32.mrf.mxu0
        %v1927 = vadd.f32 0.0, %v1926
        %v1928 = vpop.f32.mrf.mxu0
        %v1929 = vadd.f32 0.0, %v1928
        %1930 = vmatmul.bf16.gmra.mxu0 %v1844
        %v1931 = vpop.f32.mrf.mxu0
        %v1932 = vadd.f32 0.0, %v1931
        %v1933 = vpop.f32.mrf.mxu0
        %v1934 = vadd.f32 0.0, %v1933
        %1935 = vmatmul.bf16.gmra.mxu0 %v1847
        %v1936 = vpop.f32.mrf.mxu0
        %v1937 = vadd.f32 0.0, %v1936
        %v1938 = vpop.f32.mrf.mxu0
        %v1939 = vadd.f32 0.0, %v1938
        %1940 = vmatmul.bf16.gmra.mxu0 %v1850
        %v1941 = vpop.f32.mrf.mxu0
        %v1942 = vadd.f32 0.0, %v1941
        %v1943 = vpop.f32.mrf.mxu0
        %v1944 = vadd.f32 0.0, %v1943
        %1945 = vmatmul.bf16.gmra.mxu0 %v1853
        %v1946 = vpop.f32.mrf.mxu0
        %v1947 = vadd.f32 0.0, %v1946
        %v1948 = vpop.f32.mrf.mxu0
        %v1949 = vadd.f32 0.0, %v1948
        %1950 = vmatmul.bf16.gmra.mxu0 %v1856
        %v1951 = vpop.f32.mrf.mxu0
        %v1952 = vadd.f32 0.0, %v1951
        %v1953 = vpop.f32.mrf.mxu0
        %v1954 = vadd.f32 0.0, %v1953
        %1955 = vmatmul.bf16.gmra.mxu0 %v1859
        %v1956 = vpop.f32.mrf.mxu0
        %v1957 = vadd.f32 0.0, %v1956
        %v1958 = vpop.f32.mrf.mxu0
        %v1959 = vadd.f32 0.0, %v1958
        %1960 = vmatmul.bf16.gmra.mxu0 %v1862
        %v1961 = vpop.f32.mrf.mxu0
        %v1962 = vadd.f32 0.0, %v1961
        %v1963 = vpop.f32.mrf.mxu0
        %v1964 = vadd.f32 0.0, %v1963
        %1965 = vdwg.mxu0
        %v1966 = vadd.f32 %v1727, %v1877
        %v1967 = vadd.f32 %v1728, %v1879
        %v1968 = vadd.f32 %v1729, %v1882
        %v1969 = vadd.f32 %v1730, %v1884
        %v1970 = vadd.f32 %v1731, %v1887
        %v1971 = vadd.f32 %v1732, %v1889
        %v1972 = vadd.f32 %v1733, %v1892
        %v1973 = vadd.f32 %v1734, %v1894
        %v1974 = vadd.f32 %v1735, %v1897
        %v1975 = vadd.f32 %v1736, %v1899
        %v1976 = vadd.f32 %v1737, %v1902
        %v1977 = vadd.f32 %v1738, %v1904
        %v1978 = vadd.f32 %v1739, %v1907
        %v1979 = vadd.f32 %v1740, %v1909
        %v1980 = vadd.f32 %v1741, %v1912
        %v1981 = vadd.f32 %v1742, %v1914
        %v1982 = vadd.f32 %v1743, %v1917
        %v1983 = vadd.f32 %v1744, %v1919
        %v1984 = vadd.f32 %v1745, %v1922
        %v1985 = vadd.f32 %v1746, %v1924
        %v1986 = vadd.f32 %v1747, %v1927
        %v1987 = vadd.f32 %v1748, %v1929
        %v1988 = vadd.f32 %v1749, %v1932
        %v1989 = vadd.f32 %v1750, %v1934
        %v1990 = vadd.f32 %v1751, %v1937
        %v1991 = vadd.f32 %v1752, %v1939
        %v1992 = vadd.f32 %v1753, %v1942
        %v1993 = vadd.f32 %v1754, %v1944
        %v1994 = vadd.f32 %v1755, %v1947
        %v1995 = vadd.f32 %v1756, %v1949
        %v1996 = vadd.f32 %v1757, %v1952
        %v1997 = vadd.f32 %v1758, %v1954
        %v1998 = vadd.f32 %v1759, %v1957
        %v1999 = vadd.f32 %v1760, %v1959
        %v2000 = vadd.f32 %v1761, %v1962
        %v2001 = vadd.f32 %v1762, %v1964
        %v2002 = vld [vmem:[%s206 + $0x10] sm:$0xc]
        %v2003 = vld [vmem:[%s206 + $0x14] sm:$0xf]
        %v2004 = vld [vmem:[%s206 + $0x18] sm:$0xf]
        %v2005 = vld [vmem:[%s206 + $0x1c] sm:$0xf]
        %v2006 = vld [vmem:[%s206 + $0x20] sm:$0xf]
        %v2007 = vld [vmem:[%s206 + $0x24] sm:$0xf]
        %v2008 = vld [vmem:[%s206 + $0x28] sm:$0xf]
        %v2009 = vld [vmem:[%s206 + $0x2c] sm:$0xf]
        %v2010 = vld [vmem:[%s206 + $0x30] sm:$0xf]
        %v2011 = vld [vmem:[%s206 + $0x34] sm:$0xf]
        %v2012 = vld [vmem:[%s206 + $0x38] sm:$0xf]
        %v2013 = vld [vmem:[%s206 + $0x3c] sm:$0xf]
        %v2014 = vld [vmem:[%s206 + $0x40] sm:$0xf]
        %v2015 = vld [vmem:[%s206 + $0x44] sm:$0xf]
        %v2016 = vld [vmem:[%s206 + $0x48] sm:$0xf]
        %v2017 = vld [vmem:[%s206 + $0x4c] sm:$0xf]
        %v2018 = vld [vmem:[%s206 + $0x50] sm:$0xf]
        %v2019 = vld [vmem:[%s206 + $0x54] sm:$0xf]
        %v2020 = vld [vmem:[%s206 + $0x58] sm:$0xf]
        %v2021 = vld [vmem:[%s206 + $0x5c] sm:$0xf]
        %v2022 = vld [vmem:[%s206 + $0x60] sm:$0xf]
        %v2023 = vld [vmem:[%s206 + $0x64] sm:$0xf]
        %v2024 = vld [vmem:[%s206 + $0x68] sm:$0xf]
        %v2025 = vld [vmem:[%s206 + $0x6c] sm:$0xf]
        %v2026 = vld [vmem:[%s206 + $0x70] sm:$0xf]
        %v2027 = vld [vmem:[%s206 + $0x74] sm:$0xf]
        %v2028 = vld [vmem:[%s206 + $0x78] sm:$0xf]
        %v2029 = vld [vmem:[%s206 + $0x7c] sm:$0xf]
        %v2030 = vld [vmem:[%s206 + $0x80] sm:$0xf]
        %v2031 = vld [vmem:[%s206 + $0x84] sm:$0xf]
        %v2032 = vld [vmem:[%s206 + $0x88] sm:$0xf]
        %v2033 = vld [vmem:[%s206 + $0x8c] sm:$0xf]
        %v2034 = vld [vmem:[%s206 + $0x90] sm:$0xf]
        %v2035 = vld [vmem:[%s206 + $0x94] sm:$0xf]
        %v2036 = vld [vmem:[%s206 + $0x98] sm:$0xf]
        %v2037 = vld [vmem:[%s206 + $0x9c] sm:$0xf]
        %v2038 = vld [vmem:[%s206 + $0xa0] sm:$0x3]
        %v2039 = vld [vmem:[%s210 + $0xc] sm:$0x3]
        %v2077 = vunpack.c.l.b16 %v2002
        %v2078 = vunpack.c.l.b16 %v2003
        %v2079 = vunpack.c.l.b16 %v2004
        %v2080 = vunpack.c.l.b16 %v2005
        %v2081 = vunpack.c.l.b16 %v2006
        %v2082 = vunpack.c.l.b16 %v2007
        %v2083 = vunpack.c.l.b16 %v2008
        %v2084 = vunpack.c.l.b16 %v2009
        %v2085 = vunpack.c.l.b16 %v2010
        %v2086 = vunpack.c.l.b16 %v2011
        %v2087 = vunpack.c.l.b16 %v2012
        %v2088 = vunpack.c.l.b16 %v2013
        %v2089 = vunpack.c.l.b16 %v2014
        %v2090 = vunpack.c.l.b16 %v2015
        %v2091 = vunpack.c.l.b16 %v2016
        %v2092 = vunpack.c.l.b16 %v2017
        %v2093 = vunpack.c.l.b16 %v2018
        %v2094 = vunpack.c.l.b16 %v2019
        %v2095 = vunpack.c.l.b16 %v2020
        %v2096 = vunpack.c.l.b16 %v2021
        %v2097 = vunpack.c.l.b16 %v2022
        %v2098 = vunpack.c.l.b16 %v2023
        %v2099 = vunpack.c.l.b16 %v2024
        %v2100 = vunpack.c.l.b16 %v2025
        %v2101 = vunpack.c.l.b16 %v2026
        %v2102 = vunpack.c.l.b16 %v2027
        %v2103 = vunpack.c.l.b16 %v2028
        %v2104 = vunpack.c.l.b16 %v2029
        %v2105 = vunpack.c.l.b16 %v2030
        %v2106 = vunpack.c.l.b16 %v2031
        %v2107 = vunpack.c.l.b16 %v2032
        %v2108 = vunpack.c.l.b16 %v2033
        %v2109 = vunpack.c.l.b16 %v2034
        %v2110 = vunpack.c.l.b16 %v2035
        %v2111 = vunpack.c.l.b16 %v2036
        %v2112 = vunpack.c.l.b16 %v2037
        %v2113 = vunpack.c.l.b16 %v2038
        %v2114 = vpack.c.b16 %v2078, %v2077
        %v2115 = vpack.c.b16 %v2080, %v2079
        %v2116 = vpack.c.b16 %v2082, %v2081
        %v2117 = vpack.c.b16 %v2084, %v2083
        %v2118 = vpack.c.b16 %v2086, %v2085
        %v2119 = vpack.c.b16 %v2088, %v2087
        %v2120 = vpack.c.b16 %v2090, %v2089
        %v2121 = vpack.c.b16 %v2092, %v2091
        %v2122 = vpack.c.b16 %v2094, %v2093
        %v2123 = vpack.c.b16 %v2096, %v2095
        %v2124 = vpack.c.b16 %v2098, %v2097
        %v2125 = vpack.c.b16 %v2100, %v2099
        %v2126 = vpack.c.b16 %v2102, %v2101
        %v2127 = vpack.c.b16 %v2104, %v2103
        %v2128 = vpack.c.b16 %v2106, %v2105
        %v2129 = vpack.c.b16 %v2108, %v2107
        %v2130 = vpack.c.b16 %v2110, %v2109
        %v2131 = vpack.c.b16 %v2112, %v2111
        %v2132 = vpack.c.b16 %v2113, %v2113
        %v2133 = vrot.slane %v2114, 2
        %v2134 = vrot.slane %v2115, 2
        %v2135 = vsel %vm1768, %v2133, %v2134
        %v2136 = vrot.slane %v2116, 2
        %v2137 = vsel %vm1768, %v2134, %v2136
        %v2138 = vrot.slane %v2117, 2
        %v2139 = vsel %vm1768, %v2136, %v2138
        %v2140 = vrot.slane %v2118, 2
        %v2141 = vsel %vm1768, %v2138, %v2140
        %v2142 = vrot.slane %v2119, 2
        %v2143 = vsel %vm1768, %v2140, %v2142
        %v2144 = vrot.slane %v2120, 2
        %v2145 = vsel %vm1768, %v2142, %v2144
        %v2146 = vrot.slane %v2121, 2
        %v2147 = vsel %vm1768, %v2144, %v2146
        %v2148 = vrot.slane %v2122, 2
        %v2149 = vsel %vm1768, %v2146, %v2148
        %v2150 = vrot.slane %v2123, 2
        %v2151 = vsel %vm1768, %v2148, %v2150
        %v2152 = vrot.slane %v2124, 2
        %v2153 = vsel %vm1768, %v2150, %v2152
        %v2154 = vrot.slane %v2125, 2
        %v2155 = vsel %vm1768, %v2152, %v2154
        %v2156 = vrot.slane %v2126, 2
        %v2157 = vsel %vm1768, %v2154, %v2156
        %v2158 = vrot.slane %v2127, 2
        %v2159 = vsel %vm1768, %v2156, %v2158
        %v2160 = vrot.slane %v2128, 2
        %v2161 = vsel %vm1768, %v2158, %v2160
        %v2162 = vrot.slane %v2129, 2
        %v2163 = vsel %vm1768, %v2160, %v2162
        %v2164 = vrot.slane %v2130, 2
        %v2165 = vsel %vm1768, %v2162, %v2164
        %v2166 = vrot.slane %v2131, 2
        %v2167 = vsel %vm1768, %v2164, %v2166
        %v2168 = vrot.slane %v2132, 2
        %v2169 = vsel %vm1768, %v2166, %v2168
        %v2171 = vsel %vm500, %v2135, 0
        %v2174 = vsel %vm500, %v2137, 0
        %v2177 = vsel %vm500, %v2139, 0
        %v2180 = vsel %vm500, %v2141, 0
        %v2183 = vsel %vm500, %v2143, 0
        %v2186 = vsel %vm500, %v2145, 0
        %v2189 = vsel %vm500, %v2147, 0
        %v2192 = vsel %vm500, %v2149, 0
        %v2195 = vsel %vm500, %v2151, 0
        %v2198 = vsel %vm500, %v2153, 0
        %v2201 = vsel %vm500, %v2155, 0
        %v2204 = vsel %vm500, %v2157, 0
        %v2207 = vsel %vm500, %v2159, 0
        %v2210 = vsel %vm500, %v2161, 0
        %v2213 = vsel %vm500, %v2163, 0
        %v2216 = vsel %vm500, %v2165, 0
        %v2219 = vsel %vm500, %v2167, 0
        %v2222 = vsel %vm500, %v2169, 0
        %v2225 = vsel %vm555, %v2039, 0
        %2227 = vmatpush.bf16.msra.mxu0 0
        %2228 = vmatpush.bf16.msra.mxu0 0
        %2229 = vmatpush.bf16.msra.mxu0 0
        %2230 = vmatpush.bf16.msra.mxu0 0
        %2231 = vmatpush.bf16.msra.mxu0 0
        %2232 = vmatpush.bf16.msra.mxu0 0
        %2233 = vmatpush.bf16.msra.mxu0 0
        %2234 = vmatpush.bf16.msra.mxu0 %v2225
        %2235 = vmatmul.bf16.gmra.mxu0 %v2171
        %v2236 = vpop.f32.mrf.mxu0
        %v2237 = vadd.f32 0.0, %v2236
        %v2238 = vpop.f32.mrf.mxu0
        %v2239 = vadd.f32 0.0, %v2238
        %2240 = vmatmul.bf16.gmra.mxu0 %v2174
        %v2241 = vpop.f32.mrf.mxu0
        %v2242 = vadd.f32 0.0, %v2241
        %v2243 = vpop.f32.mrf.mxu0
        %v2244 = vadd.f32 0.0, %v2243
        %2245 = vmatmul.bf16.gmra.mxu0 %v2177
        %v2246 = vpop.f32.mrf.mxu0
        %v2247 = vadd.f32 0.0, %v2246
        %v2248 = vpop.f32.mrf.mxu0
        %v2249 = vadd.f32 0.0, %v2248
        %2250 = vmatmul.bf16.gmra.mxu0 %v2180
        %v2251 = vpop.f32.mrf.mxu0
        %v2252 = vadd.f32 0.0, %v2251
        %v2253 = vpop.f32.mrf.mxu0
        %v2254 = vadd.f32 0.0, %v2253
        %2255 = vmatmul.bf16.gmra.mxu0 %v2183
        %v2256 = vpop.f32.mrf.mxu0
        %v2257 = vadd.f32 0.0, %v2256
        %v2258 = vpop.f32.mrf.mxu0
        %v2259 = vadd.f32 0.0, %v2258
        %2260 = vmatmul.bf16.gmra.mxu0 %v2186
        %v2261 = vpop.f32.mrf.mxu0
        %v2262 = vadd.f32 0.0, %v2261
        %v2263 = vpop.f32.mrf.mxu0
        %v2264 = vadd.f32 0.0, %v2263
        %2265 = vmatmul.bf16.gmra.mxu0 %v2189
        %v2266 = vpop.f32.mrf.mxu0
        %v2267 = vadd.f32 0.0, %v2266
        %v2268 = vpop.f32.mrf.mxu0
        %v2269 = vadd.f32 0.0, %v2268
        %2270 = vmatmul.bf16.gmra.mxu0 %v2192
        %v2271 = vpop.f32.mrf.mxu0
        %v2272 = vadd.f32 0.0, %v2271
        %v2273 = vpop.f32.mrf.mxu0
        %v2274 = vadd.f32 0.0, %v2273
        %2275 = vmatmul.bf16.gmra.mxu0 %v2195
        %v2276 = vpop.f32.mrf.mxu0
        %v2277 = vadd.f32 0.0, %v2276
        %v2278 = vpop.f32.mrf.mxu0
        %v2279 = vadd.f32 0.0, %v2278
        %2280 = vmatmul.bf16.gmra.mxu0 %v2198
        %v2281 = vpop.f32.mrf.mxu0
        %v2282 = vadd.f32 0.0, %v2281
        %v2283 = vpop.f32.mrf.mxu0
        %v2284 = vadd.f32 0.0, %v2283
        %2285 = vmatmul.bf16.gmra.mxu0 %v2201
        %v2286 = vpop.f32.mrf.mxu0
        %v2287 = vadd.f32 0.0, %v2286
        %v2288 = vpop.f32.mrf.mxu0
        %v2289 = vadd.f32 0.0, %v2288
        %2290 = vmatmul.bf16.gmra.mxu0 %v2204
        %v2291 = vpop.f32.mrf.mxu0
        %v2292 = vadd.f32 0.0, %v2291
        %v2293 = vpop.f32.mrf.mxu0
        %v2294 = vadd.f32 0.0, %v2293
        %2295 = vmatmul.bf16.gmra.mxu0 %v2207
        %v2296 = vpop.f32.mrf.mxu0
        %v2297 = vadd.f32 0.0, %v2296
        %v2298 = vpop.f32.mrf.mxu0
        %v2299 = vadd.f32 0.0, %v2298
        %2300 = vmatmul.bf16.gmra.mxu0 %v2210
        %v2301 = vpop.f32.mrf.mxu0
        %v2302 = vadd.f32 0.0, %v2301
        %v2303 = vpop.f32.mrf.mxu0
        %v2304 = vadd.f32 0.0, %v2303
        %2305 = vmatmul.bf16.gmra.mxu0 %v2213
        %v2306 = vpop.f32.mrf.mxu0
        %v2307 = vadd.f32 0.0, %v2306
        %v2308 = vpop.f32.mrf.mxu0
        %v2309 = vadd.f32 0.0, %v2308
        %2310 = vmatmul.bf16.gmra.mxu0 %v2216
        %v2311 = vpop.f32.mrf.mxu0
        %v2312 = vadd.f32 0.0, %v2311
        %v2313 = vpop.f32.mrf.mxu0
        %v2314 = vadd.f32 0.0, %v2313
        %2315 = vmatmul.bf16.gmra.mxu0 %v2219
        %v2316 = vpop.f32.mrf.mxu0
        %v2317 = vadd.f32 0.0, %v2316
        %v2318 = vpop.f32.mrf.mxu0
        %v2319 = vadd.f32 0.0, %v2318
        %2320 = vmatmul.bf16.gmra.mxu0 %v2222
        %v2321 = vpop.f32.mrf.mxu0
        %v2322 = vadd.f32 0.0, %v2321
        %v2323 = vpop.f32.mrf.mxu0
        %v2324 = vadd.f32 0.0, %v2323
        %2325 = vdwg.mxu0
        %v2326 = vadd.f32 %v1966, %v2237
        %v2327 = vadd.f32 %v1967, %v2239
        %v2328 = vadd.f32 %v1968, %v2242
        %v2329 = vadd.f32 %v1969, %v2244
        %v2330 = vadd.f32 %v1970, %v2247
        %v2331 = vadd.f32 %v1971, %v2249
        %v2332 = vadd.f32 %v1972, %v2252
        %v2333 = vadd.f32 %v1973, %v2254
        %v2334 = vadd.f32 %v1974, %v2257
        %v2335 = vadd.f32 %v1975, %v2259
        %v2336 = vadd.f32 %v1976, %v2262
        %v2337 = vadd.f32 %v1977, %v2264
        %v2338 = vadd.f32 %v1978, %v2267
        %v2339 = vadd.f32 %v1979, %v2269
        %v2340 = vadd.f32 %v1980, %v2272
        %v2341 = vadd.f32 %v1981, %v2274
        %v2342 = vadd.f32 %v1982, %v2277
        %v2343 = vadd.f32 %v1983, %v2279
        %v2344 = vadd.f32 %v1984, %v2282
        %v2345 = vadd.f32 %v1985, %v2284
        %v2346 = vadd.f32 %v1986, %v2287
        %v2347 = vadd.f32 %v1987, %v2289
        %v2348 = vadd.f32 %v1988, %v2292
        %v2349 = vadd.f32 %v1989, %v2294
        %v2350 = vadd.f32 %v1990, %v2297
        %v2351 = vadd.f32 %v1991, %v2299
        %v2352 = vadd.f32 %v1992, %v2302
        %v2353 = vadd.f32 %v1993, %v2304
        %v2354 = vadd.f32 %v1994, %v2307
        %v2355 = vadd.f32 %v1995, %v2309
        %v2356 = vadd.f32 %v1996, %v2312
        %v2357 = vadd.f32 %v1997, %v2314
        %v2358 = vadd.f32 %v1998, %v2317
        %v2359 = vadd.f32 %v1999, %v2319
        %v2360 = vadd.f32 %v2000, %v2322
        %v2361 = vadd.f32 %v2001, %v2324
        %v2362 = vld [vmem:[%s206 + $0xa0] sm:$0x7]
        %v2363 = vld [vmem:[%s210 + $0xc] sm:$0xc]
        %v2365 = vunpack.c.l.b16 %v2362
        %v2366 = vpack.c.b16 %v2365, %v2365
        %vm2367 = vsmask.f32 5376
        %v2369 = vshrl.u32 %v2114, 16
        %v2371 = vrot.slane %v2369, 2
        %v2372 = vshll.u32 %v2114, 16
        %v2374 = vrot.slane %v2372, 3
        %v2375 = vor.u32 %v2371, %v2374
        %v2377 = vshrl.u32 %v2115, 16
        %v2379 = vrot.slane %v2377, 2
        %v2380 = vshll.u32 %v2115, 16
        %v2382 = vrot.slane %v2380, 3
        %v2383 = vor.u32 %v2379, %v2382
        %v2384 = vsel %vm2367, %v2375, %v2383
        %v2386 = vshrl.u32 %v2116, 16
        %v2388 = vrot.slane %v2386, 2
        %v2389 = vshll.u32 %v2116, 16
        %v2391 = vrot.slane %v2389, 3
        %v2392 = vor.u32 %v2388, %v2391
        %v2393 = vsel %vm2367, %v2383, %v2392
        %v2395 = vshrl.u32 %v2117, 16
        %v2397 = vrot.slane %v2395, 2
        %v2398 = vshll.u32 %v2117, 16
        %v2400 = vrot.slane %v2398, 3
        %v2401 = vor.u32 %v2397, %v2400
        %v2402 = vsel %vm2367, %v2392, %v2401
        %v2404 = vshrl.u32 %v2118, 16
        %v2406 = vrot.slane %v2404, 2
        %v2407 = vshll.u32 %v2118, 16
        %v2409 = vrot.slane %v2407, 3
        %v2410 = vor.u32 %v2406, %v2409
        %v2411 = vsel %vm2367, %v2401, %v2410
        %v2413 = vshrl.u32 %v2119, 16
        %v2415 = vrot.slane %v2413, 2
        %v2416 = vshll.u32 %v2119, 16
        %v2418 = vrot.slane %v2416, 3
        %v2419 = vor.u32 %v2415, %v2418
        %v2420 = vsel %vm2367, %v2410, %v2419
        %v2422 = vshrl.u32 %v2120, 16
        %v2424 = vrot.slane %v2422, 2
        %v2425 = vshll.u32 %v2120, 16
        %v2427 = vrot.slane %v2425, 3
        %v2428 = vor.u32 %v2424, %v2427
        %v2429 = vsel %vm2367, %v2419, %v2428
        %v2431 = vshrl.u32 %v2121, 16
        %v2433 = vrot.slane %v2431, 2
        %v2434 = vshll.u32 %v2121, 16
        %v2436 = vrot.slane %v2434, 3
        %v2437 = vor.u32 %v2433, %v2436
        %v2438 = vsel %vm2367, %v2428, %v2437
        %v2440 = vshrl.u32 %v2122, 16
        %v2442 = vrot.slane %v2440, 2
        %v2443 = vshll.u32 %v2122, 16
        %v2445 = vrot.slane %v2443, 3
        %v2446 = vor.u32 %v2442, %v2445
        %v2447 = vsel %vm2367, %v2437, %v2446
        %v2449 = vshrl.u32 %v2123, 16
        %v2451 = vrot.slane %v2449, 2
        %v2452 = vshll.u32 %v2123, 16
        %v2454 = vrot.slane %v2452, 3
        %v2455 = vor.u32 %v2451, %v2454
        %v2456 = vsel %vm2367, %v2446, %v2455
        %v2458 = vshrl.u32 %v2124, 16
        %v2460 = vrot.slane %v2458, 2
        %v2461 = vshll.u32 %v2124, 16
        %v2463 = vrot.slane %v2461, 3
        %v2464 = vor.u32 %v2460, %v2463
        %v2465 = vsel %vm2367, %v2455, %v2464
        %v2467 = vshrl.u32 %v2125, 16
        %v2469 = vrot.slane %v2467, 2
        %v2470 = vshll.u32 %v2125, 16
        %v2472 = vrot.slane %v2470, 3
        %v2473 = vor.u32 %v2469, %v2472
        %v2474 = vsel %vm2367, %v2464, %v2473
        %v2476 = vshrl.u32 %v2126, 16
        %v2478 = vrot.slane %v2476, 2
        %v2479 = vshll.u32 %v2126, 16
        %v2481 = vrot.slane %v2479, 3
        %v2482 = vor.u32 %v2478, %v2481
        %v2483 = vsel %vm2367, %v2473, %v2482
        %v2485 = vshrl.u32 %v2127, 16
        %v2487 = vrot.slane %v2485, 2
        %v2488 = vshll.u32 %v2127, 16
        %v2490 = vrot.slane %v2488, 3
        %v2491 = vor.u32 %v2487, %v2490
        %v2492 = vsel %vm2367, %v2482, %v2491
        %v2494 = vshrl.u32 %v2128, 16
        %v2496 = vrot.slane %v2494, 2
        %v2497 = vshll.u32 %v2128, 16
        %v2499 = vrot.slane %v2497, 3
        %v2500 = vor.u32 %v2496, %v2499
        %v2501 = vsel %vm2367, %v2491, %v2500
        %v2503 = vshrl.u32 %v2129, 16
        %v2505 = vrot.slane %v2503, 2
        %v2506 = vshll.u32 %v2129, 16
        %v2508 = vrot.slane %v2506, 3
        %v2509 = vor.u32 %v2505, %v2508
        %v2510 = vsel %vm2367, %v2500, %v2509
        %v2512 = vshrl.u32 %v2130, 16
        %v2514 = vrot.slane %v2512, 2
        %v2515 = vshll.u32 %v2130, 16
        %v2517 = vrot.slane %v2515, 3
        %v2518 = vor.u32 %v2514, %v2517
        %v2519 = vsel %vm2367, %v2509, %v2518
        %v2521 = vshrl.u32 %v2131, 16
        %v2523 = vrot.slane %v2521, 2
        %v2524 = vshll.u32 %v2131, 16
        %v2526 = vrot.slane %v2524, 3
        %v2527 = vor.u32 %v2523, %v2526
        %v2528 = vsel %vm2367, %v2518, %v2527
        %v2530 = vshrl.u32 %v2366, 16
        %v2532 = vrot.slane %v2530, 2
        %v2533 = vshll.u32 %v2366, 16
        %v2535 = vrot.slane %v2533, 3
        %v2536 = vor.u32 %v2532, %v2535
        %v2537 = vsel %vm2367, %v2527, %v2536
        %v2539 = vunpack.c.l.b16 %v2363
        %v2540 = vpack.c.b16 %v2539, %v2539
        %v2541 = vrot.slane %v2540, 2
        %v2543 = vsel %vm500, %v2384, 0
        %v2546 = vsel %vm500, %v2393, 0
        %v2549 = vsel %vm500, %v2402, 0
        %v2552 = vsel %vm500, %v2411, 0
        %v2555 = vsel %vm500, %v2420, 0
        %v2558 = vsel %vm500, %v2429, 0
        %v2561 = vsel %vm500, %v2438, 0
        %v2564 = vsel %vm500, %v2447, 0
        %v2567 = vsel %vm500, %v2456, 0
        %v2570 = vsel %vm500, %v2465, 0
        %v2573 = vsel %vm500, %v2474, 0
        %v2576 = vsel %vm500, %v2483, 0
        %v2579 = vsel %vm500, %v2492, 0
        %v2582 = vsel %vm500, %v2501, 0
        %v2585 = vsel %vm500, %v2510, 0
        %v2588 = vsel %vm500, %v2519, 0
        %v2591 = vsel %vm500, %v2528, 0
        %v2594 = vsel %vm500, %v2537, 0
        %v2597 = vsel %vm555, %v2541, 0
        %2599 = vmatpush.bf16.msra.mxu0 0
        %2600 = vmatpush.bf16.msra.mxu0 0
        %2601 = vmatpush.bf16.msra.mxu0 0
        %2602 = vmatpush.bf16.msra.mxu0 0
        %2603 = vmatpush.bf16.msra.mxu0 0
        %2604 = vmatpush.bf16.msra.mxu0 0
        %2605 = vmatpush.bf16.msra.mxu0 0
        %2606 = vmatpush.bf16.msra.mxu0 %v2597
        %2607 = vmatmul.bf16.gmra.mxu0 %v2543
        %v2608 = vpop.f32.mrf.mxu0
        %v2609 = vadd.f32 0.0, %v2608
        %v2610 = vpop.f32.mrf.mxu0
        %v2611 = vadd.f32 0.0, %v2610
        %2612 = vmatmul.bf16.gmra.mxu0 %v2546
        %v2613 = vpop.f32.mrf.mxu0
        %v2614 = vadd.f32 0.0, %v2613
        %v2615 = vpop.f32.mrf.mxu0
        %v2616 = vadd.f32 0.0, %v2615
        %2617 = vmatmul.bf16.gmra.mxu0 %v2549
        %v2618 = vpop.f32.mrf.mxu0
        %v2619 = vadd.f32 0.0, %v2618
        %v2620 = vpop.f32.mrf.mxu0
        %v2621 = vadd.f32 0.0, %v2620
        %2622 = vmatmul.bf16.gmra.mxu0 %v2552
        %v2623 = vpop.f32.mrf.mxu0
        %v2624 = vadd.f32 0.0, %v2623
        %v2625 = vpop.f32.mrf.mxu0
        %v2626 = vadd.f32 0.0, %v2625
        %2627 = vmatmul.bf16.gmra.mxu0 %v2555
        %v2628 = vpop.f32.mrf.mxu0
        %v2629 = vadd.f32 0.0, %v2628
        %v2630 = vpop.f32.mrf.mxu0
        %v2631 = vadd.f32 0.0, %v2630
        %2632 = vmatmul.bf16.gmra.mxu0 %v2558
        %v2633 = vpop.f32.mrf.mxu0
        %v2634 = vadd.f32 0.0, %v2633
        %v2635 = vpop.f32.mrf.mxu0
        %v2636 = vadd.f32 0.0, %v2635
        %2637 = vmatmul.bf16.gmra.mxu0 %v2561
        %v2638 = vpop.f32.mrf.mxu0
        %v2639 = vadd.f32 0.0, %v2638
        %v2640 = vpop.f32.mrf.mxu0
        %v2641 = vadd.f32 0.0, %v2640
        %2642 = vmatmul.bf16.gmra.mxu0 %v2564
        %v2643 = vpop.f32.mrf.mxu0
        %v2644 = vadd.f32 0.0, %v2643
        %v2645 = vpop.f32.mrf.mxu0
        %v2646 = vadd.f32 0.0, %v2645
        %2647 = vmatmul.bf16.gmra.mxu0 %v2567
        %v2648 = vpop.f32.mrf.mxu0
        %v2649 = vadd.f32 0.0, %v2648
        %v2650 = vpop.f32.mrf.mxu0
        %v2651 = vadd.f32 0.0, %v2650
        %2652 = vmatmul.bf16.gmra.mxu0 %v2570
        %v2653 = vpop.f32.mrf.mxu0
        %v2654 = vadd.f32 0.0, %v2653
        %v2655 = vpop.f32.mrf.mxu0
        %v2656 = vadd.f32 0.0, %v2655
        %2657 = vmatmul.bf16.gmra.mxu0 %v2573
        %v2658 = vpop.f32.mrf.mxu0
        %v2659 = vadd.f32 0.0, %v2658
        %v2660 = vpop.f32.mrf.mxu0
        %v2661 = vadd.f32 0.0, %v2660
        %2662 = vmatmul.bf16.gmra.mxu0 %v2576
        %v2663 = vpop.f32.mrf.mxu0
        %v2664 = vadd.f32 0.0, %v2663
        %v2665 = vpop.f32.mrf.mxu0
        %v2666 = vadd.f32 0.0, %v2665
        %2667 = vmatmul.bf16.gmra.mxu0 %v2579
        %v2668 = vpop.f32.mrf.mxu0
        %v2669 = vadd.f32 0.0, %v2668
        %v2670 = vpop.f32.mrf.mxu0
        %v2671 = vadd.f32 0.0, %v2670
        %2672 = vmatmul.bf16.gmra.mxu0 %v2582
        %v2673 = vpop.f32.mrf.mxu0
        %v2674 = vadd.f32 0.0, %v2673
        %v2675 = vpop.f32.mrf.mxu0
        %v2676 = vadd.f32 0.0, %v2675
        %2677 = vmatmul.bf16.gmra.mxu0 %v2585
        %v2678 = vpop.f32.mrf.mxu0
        %v2679 = vadd.f32 0.0, %v2678
        %v2680 = vpop.f32.mrf.mxu0
        %v2681 = vadd.f32 0.0, %v2680
        %2682 = vmatmul.bf16.gmra.mxu0 %v2588
        %v2683 = vpop.f32.mrf.mxu0
        %v2684 = vadd.f32 0.0, %v2683
        %v2685 = vpop.f32.mrf.mxu0
        %v2686 = vadd.f32 0.0, %v2685
        %2687 = vmatmul.bf16.gmra.mxu0 %v2591
        %v2688 = vpop.f32.mrf.mxu0
        %v2689 = vadd.f32 0.0, %v2688
        %v2690 = vpop.f32.mrf.mxu0
        %v2691 = vadd.f32 0.0, %v2690
        %2692 = vmatmul.bf16.gmra.mxu0 %v2594
        %v2693 = vpop.f32.mrf.mxu0
        %v2694 = vadd.f32 0.0, %v2693
        %v2695 = vpop.f32.mrf.mxu0
        %v2696 = vadd.f32 0.0, %v2695
        %2697 = vdwg.mxu0
        %v2698 = vadd.f32 %v2326, %v2609
        %v2699 = vadd.f32 %v2327, %v2611
        %v2700 = vadd.f32 %v2328, %v2614
        %v2701 = vadd.f32 %v2329, %v2616
        %v2702 = vadd.f32 %v2330, %v2619
        %v2703 = vadd.f32 %v2331, %v2621
        %v2704 = vadd.f32 %v2332, %v2624
        %v2705 = vadd.f32 %v2333, %v2626
        %v2706 = vadd.f32 %v2334, %v2629
        %v2707 = vadd.f32 %v2335, %v2631
        %v2708 = vadd.f32 %v2336, %v2634
        %v2709 = vadd.f32 %v2337, %v2636
        %v2710 = vadd.f32 %v2338, %v2639
        %v2711 = vadd.f32 %v2339, %v2641
        %v2712 = vadd.f32 %v2340, %v2644
        %v2713 = vadd.f32 %v2341, %v2646
        %v2714 = vadd.f32 %v2342, %v2649
        %v2715 = vadd.f32 %v2343, %v2651
        %v2716 = vadd.f32 %v2344, %v2654
        %v2717 = vadd.f32 %v2345, %v2656
        %v2718 = vadd.f32 %v2346, %v2659
        %v2719 = vadd.f32 %v2347, %v2661
        %v2720 = vadd.f32 %v2348, %v2664
        %v2721 = vadd.f32 %v2349, %v2666
        %v2722 = vadd.f32 %v2350, %v2669
        %v2723 = vadd.f32 %v2351, %v2671
        %v2724 = vadd.f32 %v2352, %v2674
        %v2725 = vadd.f32 %v2353, %v2676
        %v2726 = vadd.f32 %v2354, %v2679
        %v2727 = vadd.f32 %v2355, %v2681
        %v2728 = vadd.f32 %v2356, %v2684
        %v2729 = vadd.f32 %v2357, %v2686
        %v2730 = vadd.f32 %v2358, %v2689
        %v2731 = vadd.f32 %v2359, %v2691
        %v2732 = vadd.f32 %v2360, %v2694
        %v2733 = vadd.f32 %v2361, %v2696
        %v2734 = vld [vmem:[%s206 + $0x10] sm:$0x8]
        %v2735 = vld [vmem:[%s210 + $0x10] sm:$0x3]
        %v2737 = vunpack.c.l.b16 %v2734
        %v2738 = vpack.c.b16 %v2078, %v2737
        %vm2739 = vcmask 1044480
        %v2740 = vrot.slane %v2738, 3
        %v2741 = vrot.slane %v2115, 3
        %v2742 = vsel %vm2739, %v2740, %v2741
        %v2743 = vrot.slane %v2116, 3
        %v2744 = vsel %vm2739, %v2741, %v2743
        %v2745 = vrot.slane %v2117, 3
        %v2746 = vsel %vm2739, %v2743, %v2745
        %v2747 = vrot.slane %v2118, 3
        %v2748 = vsel %vm2739, %v2745, %v2747
        %v2749 = vrot.slane %v2119, 3
        %v2750 = vsel %vm2739, %v2747, %v2749
        %v2751 = vrot.slane %v2120, 3
        %v2752 = vsel %vm2739, %v2749, %v2751
        %v2753 = vrot.slane %v2121, 3
        %v2754 = vsel %vm2739, %v2751, %v2753
        %v2755 = vrot.slane %v2122, 3
        %v2756 = vsel %vm2739, %v2753, %v2755
        %v2757 = vrot.slane %v2123, 3
        %v2758 = vsel %vm2739, %v2755, %v2757
        %v2759 = vrot.slane %v2124, 3
        %v2760 = vsel %vm2739, %v2757, %v2759
        %v2761 = vrot.slane %v2125, 3
        %v2762 = vsel %vm2739, %v2759, %v2761
        %v2763 = vrot.slane %v2126, 3
        %v2764 = vsel %vm2739, %v2761, %v2763
        %v2765 = vrot.slane %v2127, 3
        %v2766 = vsel %vm2739, %v2763, %v2765
        %v2767 = vrot.slane %v2128, 3
        %v2768 = vsel %vm2739, %v2765, %v2767
        %v2769 = vrot.slane %v2129, 3
        %v2770 = vsel %vm2739, %v2767, %v2769
        %v2771 = vrot.slane %v2130, 3
        %v2772 = vsel %vm2739, %v2769, %v2771
        %v2773 = vrot.slane %v2131, 3
        %v2774 = vsel %vm2739, %v2771, %v2773
        %v2775 = vrot.slane %v2366, 3
        %v2776 = vsel %vm2739, %v2773, %v2775
        %v2778 = vsel %vm500, %v2742, 0
        %v2781 = vsel %vm500, %v2744, 0
        %v2784 = vsel %vm500, %v2746, 0
        %v2787 = vsel %vm500, %v2748, 0
        %v2790 = vsel %vm500, %v2750, 0
        %v2793 = vsel %vm500, %v2752, 0
        %v2796 = vsel %vm500, %v2754, 0
        %v2799 = vsel %vm500, %v2756, 0
        %v2802 = vsel %vm500, %v2758, 0
        %v2805 = vsel %vm500, %v2760, 0
        %v2808 = vsel %vm500, %v2762, 0
        %v2811 = vsel %vm500, %v2764, 0
        %v2814 = vsel %vm500, %v2766, 0
        %v2817 = vsel %vm500, %v2768, 0
        %v2820 = vsel %vm500, %v2770, 0
        %v2823 = vsel %vm500, %v2772, 0
        %v2826 = vsel %vm500, %v2774, 0
        %v2829 = vsel %vm500, %v2776, 0
        %v2832 = vsel %vm555, %v2735, 0
        %2834 = vmatpush.bf16.msra.mxu0 0
        %2835 = vmatpush.bf16.msra.mxu0 0
        %2836 = vmatpush.bf16.msra.mxu0 0
        %2837 = vmatpush.bf16.msra.mxu0 0
        %2838 = vmatpush.bf16.msra.mxu0 0
        %2839 = vmatpush.bf16.msra.mxu0 0
        %2840 = vmatpush.bf16.msra.mxu0 0
        %2841 = vmatpush.bf16.msra.mxu0 %v2832
        %2842 = vmatmul.bf16.gmra.mxu0 %v2778
        %v2843 = vpop.f32.mrf.mxu0
        %v2844 = vadd.f32 0.0, %v2843
        %v2845 = vpop.f32.mrf.mxu0
        %v2846 = vadd.f32 0.0, %v2845
        %2847 = vmatmul.bf16.gmra.mxu0 %v2781
        %v2848 = vpop.f32.mrf.mxu0
        %v2849 = vadd.f32 0.0, %v2848
        %v2850 = vpop.f32.mrf.mxu0
        %v2851 = vadd.f32 0.0, %v2850
        %2852 = vmatmul.bf16.gmra.mxu0 %v2784
        %v2853 = vpop.f32.mrf.mxu0
        %v2854 = vadd.f32 0.0, %v2853
        %v2855 = vpop.f32.mrf.mxu0
        %v2856 = vadd.f32 0.0, %v2855
        %2857 = vmatmul.bf16.gmra.mxu0 %v2787
        %v2858 = vpop.f32.mrf.mxu0
        %v2859 = vadd.f32 0.0, %v2858
        %v2860 = vpop.f32.mrf.mxu0
        %v2861 = vadd.f32 0.0, %v2860
        %2862 = vmatmul.bf16.gmra.mxu0 %v2790
        %v2863 = vpop.f32.mrf.mxu0
        %v2864 = vadd.f32 0.0, %v2863
        %v2865 = vpop.f32.mrf.mxu0
        %v2866 = vadd.f32 0.0, %v2865
        %2867 = vmatmul.bf16.gmra.mxu0 %v2793
        %v2868 = vpop.f32.mrf.mxu0
        %v2869 = vadd.f32 0.0, %v2868
        %v2870 = vpop.f32.mrf.mxu0
        %v2871 = vadd.f32 0.0, %v2870
        %2872 = vmatmul.bf16.gmra.mxu0 %v2796
        %v2873 = vpop.f32.mrf.mxu0
        %v2874 = vadd.f32 0.0, %v2873
        %v2875 = vpop.f32.mrf.mxu0
        %v2876 = vadd.f32 0.0, %v2875
        %2877 = vmatmul.bf16.gmra.mxu0 %v2799
        %v2878 = vpop.f32.mrf.mxu0
        %v2879 = vadd.f32 0.0, %v2878
        %v2880 = vpop.f32.mrf.mxu0
        %v2881 = vadd.f32 0.0, %v2880
        %2882 = vmatmul.bf16.gmra.mxu0 %v2802
        %v2883 = vpop.f32.mrf.mxu0
        %v2884 = vadd.f32 0.0, %v2883
        %v2885 = vpop.f32.mrf.mxu0
        %v2886 = vadd.f32 0.0, %v2885
        %2887 = vmatmul.bf16.gmra.mxu0 %v2805
        %v2888 = vpop.f32.mrf.mxu0
        %v2889 = vadd.f32 0.0, %v2888
        %v2890 = vpop.f32.mrf.mxu0
        %v2891 = vadd.f32 0.0, %v2890
        %2892 = vmatmul.bf16.gmra.mxu0 %v2808
        %v2893 = vpop.f32.mrf.mxu0
        %v2894 = vadd.f32 0.0, %v2893
        %v2895 = vpop.f32.mrf.mxu0
        %v2896 = vadd.f32 0.0, %v2895
        %2897 = vmatmul.bf16.gmra.mxu0 %v2811
        %v2898 = vpop.f32.mrf.mxu0
        %v2899 = vadd.f32 0.0, %v2898
        %v2900 = vpop.f32.mrf.mxu0
        %v2901 = vadd.f32 0.0, %v2900
        %2902 = vmatmul.bf16.gmra.mxu0 %v2814
        %v2903 = vpop.f32.mrf.mxu0
        %v2904 = vadd.f32 0.0, %v2903
        %v2905 = vpop.f32.mrf.mxu0
        %v2906 = vadd.f32 0.0, %v2905
        %2907 = vmatmul.bf16.gmra.mxu0 %v2817
        %v2908 = vpop.f32.mrf.mxu0
        %v2909 = vadd.f32 0.0, %v2908
        %v2910 = vpop.f32.mrf.mxu0
        %v2911 = vadd.f32 0.0, %v2910
        %2912 = vmatmul.bf16.gmra.mxu0 %v2820
        %v2913 = vpop.f32.mrf.mxu0
        %v2914 = vadd.f32 0.0, %v2913
        %v2915 = vpop.f32.mrf.mxu0
        %v2916 = vadd.f32 0.0, %v2915
        %2917 = vmatmul.bf16.gmra.mxu0 %v2823
        %v2918 = vpop.f32.mrf.mxu0
        %v2919 = vadd.f32 0.0, %v2918
        %v2920 = vpop.f32.mrf.mxu0
        %v2921 = vadd.f32 0.0, %v2920
        %2922 = vmatmul.bf16.gmra.mxu0 %v2826
        %v2923 = vpop.f32.mrf.mxu0
        %v2924 = vadd.f32 0.0, %v2923
        %v2925 = vpop.f32.mrf.mxu0
        %v2926 = vadd.f32 0.0, %v2925
        %2927 = vmatmul.bf16.gmra.mxu0 %v2829
        %v2928 = vpop.f32.mrf.mxu0
        %v2929 = vadd.f32 0.0, %v2928
        %v2930 = vpop.f32.mrf.mxu0
        %v2931 = vadd.f32 0.0, %v2930
        %2932 = vdwg.mxu0
        %v2933 = vadd.f32 %v2698, %v2844
        %v2934 = vadd.f32 %v2699, %v2846
        %v2935 = vadd.f32 %v2700, %v2849
        %v2936 = vadd.f32 %v2701, %v2851
        %v2937 = vadd.f32 %v2702, %v2854
        %v2938 = vadd.f32 %v2703, %v2856
        %v2939 = vadd.f32 %v2704, %v2859
        %v2940 = vadd.f32 %v2705, %v2861
        %v2941 = vadd.f32 %v2706, %v2864
        %v2942 = vadd.f32 %v2707, %v2866
        %v2943 = vadd.f32 %v2708, %v2869
        %v2944 = vadd.f32 %v2709, %v2871
        %v2945 = vadd.f32 %v2710, %v2874
        %v2946 = vadd.f32 %v2711, %v2876
        %v2947 = vadd.f32 %v2712, %v2879
        %v2948 = vadd.f32 %v2713, %v2881
        %v2949 = vadd.f32 %v2714, %v2884
        %v2950 = vadd.f32 %v2715, %v2886
        %v2951 = vadd.f32 %v2716, %v2889
        %v2952 = vadd.f32 %v2717, %v2891
        %v2953 = vadd.f32 %v2718, %v2894
        %v2954 = vadd.f32 %v2719, %v2896
        %v2955 = vadd.f32 %v2720, %v2899
        %v2956 = vadd.f32 %v2721, %v2901
        %v2957 = vadd.f32 %v2722, %v2904
        %v2958 = vadd.f32 %v2723, %v2906
        %v2959 = vadd.f32 %v2724, %v2909
        %v2960 = vadd.f32 %v2725, %v2911
        %v2961 = vadd.f32 %v2726, %v2914
        %v2962 = vadd.f32 %v2727, %v2916
        %v2963 = vadd.f32 %v2728, %v2919
        %v2964 = vadd.f32 %v2729, %v2921
        %v2965 = vadd.f32 %v2730, %v2924
        %v2966 = vadd.f32 %v2731, %v2926
        %v2967 = vadd.f32 %v2732, %v2929
        %v2968 = vadd.f32 %v2733, %v2931
        %v2969 = vld [vmem:[%s213] sm:$0x1]
        %v2971 = vperm.slane %v2969, 0
        %v2973 = vadd.f32 %v2933, %v2971
        %v2974 = vadd.f32 %v2934, %v2971
        %v2975 = vadd.f32 %v2935, %v2971
        %v2976 = vadd.f32 %v2936, %v2971
        %v2977 = vadd.f32 %v2937, %v2971
        %v2978 = vadd.f32 %v2938, %v2971
        %v2979 = vadd.f32 %v2939, %v2971
        %v2980 = vadd.f32 %v2940, %v2971
        %v2981 = vadd.f32 %v2941, %v2971
        %v2982 = vadd.f32 %v2942, %v2971
        %v2983 = vadd.f32 %v2943, %v2971
        %v2984 = vadd.f32 %v2944, %v2971
        %v2985 = vadd.f32 %v2945, %v2971
        %v2986 = vadd.f32 %v2946, %v2971
        %v2987 = vadd.f32 %v2947, %v2971
        %v2988 = vadd.f32 %v2948, %v2971
        %v2989 = vadd.f32 %v2949, %v2971
        %v2990 = vadd.f32 %v2950, %v2971
        %v2991 = vadd.f32 %v2951, %v2971
        %v2992 = vadd.f32 %v2952, %v2971
        %v2993 = vadd.f32 %v2953, %v2971
        %v2994 = vadd.f32 %v2954, %v2971
        %v2995 = vadd.f32 %v2955, %v2971
        %v2996 = vadd.f32 %v2956, %v2971
        %v2997 = vadd.f32 %v2957, %v2971
        %v2998 = vadd.f32 %v2958, %v2971
        %v2999 = vadd.f32 %v2959, %v2971
        %v3000 = vadd.f32 %v2960, %v2971
        %v3001 = vadd.f32 %v2961, %v2971
        %v3002 = vadd.f32 %v2962, %v2971
        %v3003 = vadd.f32 %v2963, %v2971
        %v3004 = vadd.f32 %v2964, %v2971
        %v3005 = vadd.f32 %v2965, %v2971
        %v3006 = vadd.f32 %v2966, %v2971
        %v3007 = vadd.f32 %v2967, %v2971
        %v3008 = vadd.f32 %v2968, %v2971
        %v3009 = vmax.f32 %v2973, 0.0
        %v3010 = vmax.f32 %v2974, 0.0
        %v3011 = vmax.f32 %v2975, 0.0
        %v3012 = vmax.f32 %v2976, 0.0
        %v3013 = vmax.f32 %v2977, 0.0
        %v3014 = vmax.f32 %v2978, 0.0
        %v3015 = vmax.f32 %v2979, 0.0
        %v3016 = vmax.f32 %v2980, 0.0
        %v3017 = vmax.f32 %v2981, 0.0
        %v3018 = vmax.f32 %v2982, 0.0
        %v3019 = vmax.f32 %v2983, 0.0
        %v3020 = vmax.f32 %v2984, 0.0
        %v3021 = vmax.f32 %v2985, 0.0
        %v3022 = vmax.f32 %v2986, 0.0
        %v3023 = vmax.f32 %v2987, 0.0
        %v3024 = vmax.f32 %v2988, 0.0
        %v3025 = vmax.f32 %v2989, 0.0
        %v3026 = vmax.f32 %v2990, 0.0
        %v3027 = vmax.f32 %v2991, 0.0
        %v3028 = vmax.f32 %v2992, 0.0
        %v3029 = vmax.f32 %v2993, 0.0
        %v3030 = vmax.f32 %v2994, 0.0
        %v3031 = vmax.f32 %v2995, 0.0
        %v3032 = vmax.f32 %v2996, 0.0
        %v3033 = vmax.f32 %v2997, 0.0
        %v3034 = vmax.f32 %v2998, 0.0
        %v3035 = vmax.f32 %v2999, 0.0
        %v3036 = vmax.f32 %v3000, 0.0
        %v3037 = vmax.f32 %v3001, 0.0
        %v3038 = vmax.f32 %v3002, 0.0
        %v3039 = vmax.f32 %v3003, 0.0
        %v3040 = vmax.f32 %v3004, 0.0
        %v3041 = vmax.f32 %v3005, 0.0
        %v3042 = vmax.f32 %v3006, 0.0
        %v3043 = vmax.f32 %v3007, 0.0
        %v3044 = vmax.f32 %v3008, 0.0
        %3045 = vst [vmem:[%s201] sm:$0xff] %v3009
        %3046 = vst [vmem:[%s201 + $0x8] sm:$0xff] %v3010
        %3047 = vst [vmem:[%s201 + $0x10] sm:$0xff] %v3011
        %3048 = vst [vmem:[%s201 + $0x18] sm:$0xff] %v3012
        %3049 = vst [vmem:[%s201 + $0x20] sm:$0xff] %v3013
        %3050 = vst [vmem:[%s201 + $0x28] sm:$0xff] %v3014
        %3051 = vst [vmem:[%s201 + $0x30] sm:$0xff] %v3015
        %3052 = vst [vmem:[%s201 + $0x38] sm:$0xff] %v3016
        %3053 = vst [vmem:[%s201 + $0x40] sm:$0xff] %v3017
        %3054 = vst [vmem:[%s201 + $0x48] sm:$0xff] %v3018
        %3055 = vst [vmem:[%s201 + $0x50] sm:$0xff] %v3019
        %3056 = vst [vmem:[%s201 + $0x58] sm:$0xff] %v3020
        %3057 = vst [vmem:[%s201 + $0x60] sm:$0xff] %v3021
        %3058 = vst [vmem:[%s201 + $0x68] sm:$0xff] %v3022
        %3059 = vst [vmem:[%s201 + $0x70] sm:$0xff] %v3023
        %3060 = vst [vmem:[%s201 + $0x78] sm:$0xff] %v3024
        %3061 = vst [vmem:[%s201 + $0x80] sm:$0xff] %v3025
        %3062 = vst [vmem:[%s201 + $0x88] sm:$0xff] %v3026
        %3063 = vst [vmem:[%s201 + $0x90] sm:$0xff] %v3027
        %3064 = vst [vmem:[%s201 + $0x98] sm:$0xff] %v3028
        %3065 = vst [vmem:[%s201 + $0xa0] sm:$0xff] %v3029
        %3066 = vst [vmem:[%s201 + $0xa8] sm:$0xff] %v3030
        %3067 = vst [vmem:[%s201 + $0xb0] sm:$0xff] %v3031
        %3068 = vst [vmem:[%s201 + $0xb8] sm:$0xff] %v3032
        %3069 = vst [vmem:[%s201 + $0xc0] sm:$0xff] %v3033
        %3070 = vst [vmem:[%s201 + $0xc8] sm:$0xff] %v3034
        %3071 = vst [vmem:[%s201 + $0xd0] sm:$0xff] %v3035
        %3072 = vst [vmem:[%s201 + $0xd8] sm:$0xff] %v3036
        %3073 = vst [vmem:[%s201 + $0xe0] sm:$0xff] %v3037
        %3074 = vst [vmem:[%s201 + $0xe8] sm:$0xff] %v3038
        %3075 = vst [vmem:[%s201 + $0xf0] sm:$0xff] %v3039
        %3076 = vst [vmem:[%s201 + $0xf8] sm:$0xff] %v3040
        %3077 = vst [vmem:[%s201 + $0x100] sm:$0xff] %v3041
        %3078 = vst [vmem:[%s201 + $0x108] sm:$0xff] %v3042
        %3079 = vst [vmem:[%s201 + $0x110] sm:$0xff] %v3043
        %3080 = vst [vmem:[%s201 + $0x118] sm:$0xff] %v3044
        %s3081 = sand.u32 %s117, 1
        %s3082 = scalar_lea.sflag [#allocation3], %s3081
        %s3083 = sand.u32 %s117, 1
        %s3084 = smul.addr %s3083, 288
        %s3085 = scalar_lea.vmem [#allocation2], %s3084
        // Predicated region
        $region33: #{tpu_custom_call.1} parent=31 // pred_check
          %p3086 = pneg %p127
        $region34: #{tpu_custom_call.1} parent=31 // pred_check_branch
          %3088 = sbr.rel (%p3086) target = $region36
        $region35: #{tpu_custom_call.1} parent=31 // pred_region
          %3090 = vsyncadd %s3082, 0
          %s3091 = smul.addr %s21, 36
          %s3092 = sadd.s32 %s22, %s3091
          %s3093 = smul.addr %s3092, 8
          %s3094 = scalar_lea.hbm %s3, %s3093
          %s3095 = sshll.u32 %s3085, 4
          %s3096 = int_to_ptr.vmem [resolvable:$true] %s3095
          %s3097 = sshll.u32 %s3094, 4
          %s3098 = int_to_ptr.hbm [resolvable:$true] %s3097
          %3103 = dma.vmem_to_hbm [thread:$0]  %s3096, 4608, %s3098, %s3082, 128, 128, 8
        $region36: #{tpu_custom_call.1} parent=31 // pred_fallthru
          _
      $region32: #{tpu_custom_call.1} parent=5 // pred_fallthru
        _
      %p3104 = scmp.le.s32.totalorder 2, %s12
      // Predicated region
      $region37: #{tpu_custom_call.1} parent=5 // pred_check
        %p3105 = pneg %p3104
      $region38: #{tpu_custom_call.1} parent=5 // pred_check_branch
        %3107 = sbr.rel (%p3105) target = $region40
      $region39: #{tpu_custom_call.1} parent=5 // pred_region
        %s3108 = ssub.s32 %s12, 2
        // Predicated region
        $region41: #{tpu_custom_call.1} parent=39 // pred_check
          %p3109 = pneg %p133
        $region42: #{tpu_custom_call.1} parent=39 // pred_check_branch
          %3111 = sbr.rel (%p3109) target = $region44
        $region43: #{tpu_custom_call.1} parent=39 // pred_region
          %s3112 = sand.u32 %s118, 1
          %s3113 = scalar_lea.sflag [#allocation3], %s3112
          %s3114 = sand.u32 %s118, 1
          %s3115 = smul.addr %s3114, 288
          %s3116 = scalar_lea.vmem [#allocation2], %s3115
          %3118 = dma.done %s3113, 4608
        $region44: #{tpu_custom_call.1} parent=39 // pred_fallthru
          _
      $region40: #{tpu_custom_call.1} parent=5 // pred_fallthru
        _
    $region6: #{tpu_custom_call.1} parent=1 // loop_footer
      %s16 = sadd.s32 1, %s12
    $region7: #{tpu_custom_call.1} parent=1 // loop_footer_branch
      %11 = sbr.rel target = $region3
    $region8: #{tpu_custom_call.1} parent=1 // loop_exit
      _
    %3119 = vsyncpa [#allocation3], 1
    %s3120 = scalar_lea.sflag [#allocation3], 1
    %3121 = vsyncpa %s3120, 1

</llo_original>
